<compile_context>
chip_gen: v6e
topology: v6e:2x2x1
jax: 0.10.0
libtpu: 0.0.40
codegen_flags: <defaults>
</compile_context>

<pallas_src>
import math
import functools

import jax
import jax.numpy as jnp
import numpy as np
from jax.experimental import pallas as pl
from jax.experimental.pallas import tpu as pltpu

_MXU_DTYPE = jnp.bfloat16          # MXU inputs (f32 accumulation); elementwise,
                                   # softmax and GELU math stays in f32.
_NEG_INF = -1e30
_VMEM_LIMIT = 32 * 1024 * 1024     # within every generation's scoped budget


def _largest_divisor_leq(n, cap):
    for d in range(min(cap, n), 0, -1):
        if n % d == 0:
            return d
    return 1


# ---------------------------------------------------------------------------
# Exact (erf-based) GELU for in-kernel use, like torch.nn.GELU() default.
# Abramowitz-Stegun 7.1.26 (max abs err ~1.5e-7); reciprocal goes to the EUP.
# ---------------------------------------------------------------------------
def _erf_kernel(x):
    a1, a2, a3, a4, a5 = (0.254829592, -0.284496736, 1.421413741,
                          -1.453152027, 1.061405429)
    p = 0.3275911
    ax = jnp.abs(x)
    t = pl.reciprocal(1.0 + p * ax, approx=True)
    poly = ((((a5 * t + a4) * t + a3) * t + a2) * t + a1) * t
    y = 1.0 - poly * jnp.exp(-ax * ax)
    return jnp.where(x >= 0, y, -y)


def _gelu_kernel(x):
    return 0.5 * x * (1.0 + _erf_kernel(x * (1.0 / math.sqrt(2.0))))


# ---------------------------------------------------------------------------
# Kernel A: fused qkv 1x1 conv + depthwise 3x3 conv (zero padding 1)
# ---------------------------------------------------------------------------
def _qkv_dw_kernel(x_ref, wq_ref, bq_ref, wd_ref, bd_ref, o_ref, pad_ref):
    # x_ref : (H, W, C) channel-last tile (one batch element)
    # wq_ref: (C, 3C)   bq_ref: (1, 3C)     1x1 conv
    # wd_ref: (9, 3C)   bd_ref: (1, 3C)     depthwise 3x3 taps
    # o_ref : (H, W, 3C) (bf16)
    # pad_ref: VMEM scratch (H+2, W+2, 3C), zero-padded dwconv input
    H, W, C = x_ref.shape
    C3 = o_ref.shape[-1]

    # 1x1 conv: one big channel-last matmul on the MXU.
    x2 = x_ref[...].reshape(H * W, C)
    t = jnp.dot(x2.astype(_MXU_DTYPE), wq_ref[...].astype(_MXU_DTYPE),
                preferred_element_type=jnp.float32) + bq_ref[...]

    # Depthwise 3x3 as 9 shifted reads of the zero-padded tile (f32 math).
    pad_ref[...] = jnp.zeros((H + 2, W + 2, C3), jnp.float32)
    pad_ref[1:H + 1, 1:W + 1, :] = t.reshape(H, W, C3)

    wd = wd_ref[...]                                   # (9, 3C)
    acc = pad_ref[0:H, 0:W, :] * wd[0][None, None, :]
    for tap in range(1, 9):
        dy, dx = divmod(tap, 3)
        acc = acc + pad_ref[dy:dy + H, dx:dx + W, :] * wd[tap][None, None, :]
    o_ref[...] = (acc + bd_ref[...][None]).astype(o_ref.dtype)


def qkv_dwconv(x_cl, qkv_w, qkv_b, dw_w, dw_b, *, out_dtype):
    """Fused 1x1 qkv conv + depthwise 3x3 conv.  x_cl: (B, H, W, C)."""
    B, H, W, C = x_cl.shape
    C3 = qkv_w.shape[1]
    # TODO(synk): for large images, tile rows with a 1-row halo instead of
    # holding the whole (H+2, W+2, 3C) plane in VMEM.
    return pl.pallas_call(
        _qkv_dw_kernel,
        out_shape=jax.ShapeDtypeStruct((B, H, W, C3), out_dtype),
        grid=(B,),
        in_specs=[
            pl.BlockSpec((None, H, W, C), lambda b: (b, 0, 0, 0)),
            pl.BlockSpec((C, C3), lambda b: (0, 0)),
            pl.BlockSpec((1, C3), lambda b: (0, 0)),
            pl.BlockSpec((9, C3), lambda b: (0, 0)),
            pl.BlockSpec((1, C3), lambda b: (0, 0)),
        ],
        out_specs=pl.BlockSpec((None, H, W, C3), lambda b: (b, 0, 0, 0)),
        scratch_shapes=[pltpu.VMEM((H + 2, W + 2, C3), jnp.float32)],
        compiler_params=pltpu.CompilerParams(
            dimension_semantics=("parallel",),
            vmem_limit_bytes=_VMEM_LIMIT),
    )(x_cl, qkv_w, qkv_b.reshape(1, C3), dw_w.T, dw_b.reshape(1, C3))


# ---------------------------------------------------------------------------
# Kernel B: window attention + GMLP gate + fused project_out
# ---------------------------------------------------------------------------
def _wattn_kernel(qkv_ref, tempc_ref, bias_ref, gwT_ref, gb_ref, pw_ref,
                  pb_ref, o_ref, *, ws, wblk):
    # qkv_ref: (ws, wblk*ws, 3C) channel-last spatial tile (wblk windows, bf16)
    # tempc  : (C, 1)  per-channel temperature (head value broadcast)
    # bias   : (C, C)  0 inside a head's channel block, -1e30 across heads
    # gwT    : (ws2, ws2) GMLP weight (transposed for channel-last tokens)
    # gb     : (ws2, 1)   GMLP bias
    # pw, pb : (C, C), (1, C) fused project_out 1x1 conv
    # o_ref  : (ws, wblk*ws, C)
    C3 = qkv_ref.shape[-1]
    C = C3 // 3
    ws2 = ws * ws

    tempc = tempc_ref[...]
    bias = bias_ref[...]
    gwT = gwT_ref[...].astype(_MXU_DTYPE)
    gb = gb_ref[...]
    pw = pw_ref[...].astype(_MXU_DTYPE)
    pb = pb_ref[...]

    # One full-tile (lane-dense) load; per-window slicing happens on the value.
    qkv_all = qkv_ref[...].astype(jnp.float32)          # (ws, wblk*ws, 3C)

    for wi in range(wblk):                      # unrolled; windows independent
        blk = qkv_all[:, wi * ws:(wi + 1) * ws, :]       # (ws, ws, 3C)
        qkv_cl = blk.reshape(ws2, C3)                    # tokens x channels
        q = qkv_cl[:, 0:C]
        k = qkv_cl[:, C:2 * C]
        v = qkv_cl[:, 2 * C:3 * C].astype(_MXU_DTYPE)

        # All-head channel-attention scores in one matmul + head-block mask.
        s = jnp.dot(q.T.astype(_MXU_DTYPE), k.astype(_MXU_DTYPE),
                    preferred_element_type=jnp.float32)         # (C, C)
        s = s * tempc + bias
        s = s - jnp.max(s, axis=-1, keepdims=True)
        e = jnp.exp(s)
        p = e * pl.reciprocal(jnp.sum(e, axis=-1, keepdims=True), approx=True)

        # Context (channel-last): ctx[t, c1] = sum_c2 v[t, c2] * p[c1, c2].
        ctx = jax.lax.dot_general(v, p.astype(_MXU_DTYPE),
                                  (((1,), (1,)), ((), ())),
                                  preferred_element_type=jnp.float32)  # (ws2, C)

        # GMLP gate for all heads/channels in a single matmul.
        gate = _gelu_kernel(
            jnp.dot(gwT, v, preferred_element_type=jnp.float32) + gb)

        # Gated output + fused project_out (1x1 conv commutes with the crop).
        o_cl = (ctx * gate).astype(_MXU_DTYPE)
        o_p = jnp.dot(o_cl, pw, preferred_element_type=jnp.float32) + pb
        o_ref[:, wi * ws:(wi + 1) * ws, :] = (
            o_p.reshape(ws, ws, C).astype(o_ref.dtype))


def window_attention(qkv_cl, temp_c, attn_bias, gmlp_wT, gmlp_b_col,
                     proj_w, proj_b_row, *, window_size, out_dtype):
    B, Hx, Wx, C3 = qkv_cl.shape
    C = C3 // 3
    ws = window_size
    ws2 = ws * ws
    h1, w1 = Hx // ws, Wx // ws
    wblk = _largest_divisor_leq(w1, 8)          # windows per grid step

    kernel = functools.partial(_wattn_kernel, ws=ws, wblk=wblk)
    return pl.pallas_call(
        kernel,
        out_shape=jax.ShapeDtypeStruct((B, Hx, Wx, C), out_dtype),
        grid=(B, h1, w1 // wblk),
        in_specs=[
            pl.BlockSpec((None, ws, wblk * ws, C3), lambda b, i, j: (b, i, j, 0)),
            pl.BlockSpec((C, 1), lambda b, i, j: (0, 0)),
            pl.BlockSpec((C, C), lambda b, i, j: (0, 0)),
            pl.BlockSpec((ws2, ws2), lambda b, i, j: (0, 0)),
            pl.BlockSpec((ws2, 1), lambda b, i, j: (0, 0)),
            pl.BlockSpec((C, C), lambda b, i, j: (0, 0)),
            pl.BlockSpec((1, C), lambda b, i, j: (0, 0)),
        ],
        out_specs=pl.BlockSpec((None, ws, wblk * ws, C),
                               lambda b, i, j: (b, i, j, 0)),
        compiler_params=pltpu.CompilerParams(
            dimension_semantics=("parallel", "parallel", "parallel"),
            vmem_limit_bytes=_VMEM_LIMIT),
    )(qkv_cl, temp_c, attn_bias, gmlp_wT, gmlp_b_col, proj_w, proj_b_row)


# ---------------------------------------------------------------------------
# Full WAttention forward
# ---------------------------------------------------------------------------
def wattention_forward(x, p, num_heads, window_size):
    B, C, H, W = x.shape
    ws = window_size
    c_head = C // num_heads
    ws2 = ws * ws

    # NCHW -> NHWC once at the boundary.
    x_cl = jnp.transpose(x, (0, 2, 3, 1))

    # Fused qkv 1x1 conv + depthwise 3x3 conv (single HBM pass, channel-last).
    # The qkv intermediate is stored bf16: q/k/v enter the MXU as bf16 in
    # kernel B either way, so this halves HBM traffic with identical numerics.
    qkv_cl = qkv_dwconv(x_cl, p['qkv_w'], p['qkv_b'], p['dw_w'], p['dw_b'],
                        out_dtype=jnp.bfloat16)

    # check_image_size: reflect-pad spatial dims to a multiple of window_size.
    pad_h = (ws - H % ws) % ws
    pad_w = (ws - W % ws) % ws
    if pad_h or pad_w:
        qkv_cl = jnp.pad(qkv_cl, ((0, 0), (0, pad_h), (0, pad_w), (0, 0)),
                         mode='reflect')

    # Per-channel temperature and additive head-block mask: the softmax of the
    # full (C, C) score matrix is restricted to each head's channel block.
    head_id = jnp.arange(C) // c_head
    attn_bias = jnp.where(head_id[:, None] == head_id[None, :],
                          0.0, _NEG_INF).astype(jnp.float32)
    temp_c = jnp.repeat(p['temperature'], c_head).reshape(C, 1).astype(jnp.float32)

    out_cl = window_attention(
        qkv_cl, temp_c, attn_bias,
        p['gmlp_w'].T, p['gmlp_b'].reshape(ws2, 1),
        p['proj_w'], p['proj_b'].reshape(1, C),
        window_size=ws, out_dtype=x.dtype)

    # Crop the window padding, NHWC -> NCHW once at the boundary.
    return jnp.transpose(out_cl[:, :H, :W, :], (0, 3, 1, 2))


# ---------------------------------------------------------------------------
# Pure-JAX reference (same math, XLA ops, f32) for the correctness check
# ---------------------------------------------------------------------------
def reference_forward(x, p, num_heads, window_size):
    B, C, H, W = x.shape
    ws = window_size
    xf = jnp.transpose(x, (0, 2, 3, 1)).reshape(-1, C)
    qkvf = xf @ p['qkv_w'] + p['qkv_b']
    qkv = jnp.transpose(qkvf.reshape(B, H, W, 3 * C), (0, 3, 1, 2))
    wdw = p['dw_w'].reshape(3 * C, 1, 3, 3)
    qkv = jax.lax.conv_general_dilated(
        qkv, wdw, (1, 1), ((1, 1), (1, 1)),
        feature_group_count=3 * C,
        dimension_numbers=('NCHW', 'OIHW', 'NCHW'))
    qkv = qkv + p['dw_b'].reshape(1, 3 * C, 1, 1)

    pad_h = (ws - H % ws) % ws
    pad_w = (ws - W % ws) % ws
    if pad_h or pad_w:
        qkv = jnp.pad(qkv, ((0, 0), (0, 0), (0, pad_h), (0, pad_w)),
                      mode='reflect')
    Hx, Wx = H + pad_h, W + pad_w

    h1, w1 = Hx // ws, Wx // ws
    c_head = C // num_heads
    t = qkv.reshape(B, 3, num_heads, c_head, h1, ws, w1, ws)
    t = jnp.transpose(t, (1, 0, 4, 6, 2, 3, 5, 7)).reshape(
        3, B * h1 * w1, num_heads, c_head, ws * ws)
    q, k, v = t[0], t[1], t[2]
    attn = jnp.einsum('whce,whde->whcd', q, k) * \
        p['temperature'][None, :, None, None]
    attn = jax.nn.softmax(attn, axis=-1)
    o = jnp.einsum('whcd,whde->whce', attn, v)
    gate = jax.nn.gelu(jnp.einsum('whce,ef->whcf', v, p['gmlp_w'])
                       + p['gmlp_b'], approximate=False)
    o = o * gate
    o = o.reshape(B, h1, w1, num_heads, c_head, ws, ws)
    o = jnp.transpose(o, (0, 3, 4, 1, 5, 2, 6)).reshape(B, C, Hx, Wx)
    o = o[:, :, :H, :W]
    of = jnp.transpose(o, (0, 2, 3, 1)).reshape(-1, C)
    of = of @ p['proj_w'] + p['proj_b']
    return jnp.transpose(of.reshape(B, H, W, C), (0, 3, 1, 2))


# ---------------------------------------------------------------------------
# Deterministic parameter init (shapes from WAttention.__init__)
# ---------------------------------------------------------------------------
def init_params(key, dim, num_heads, window_size):
    ws2 = window_size ** 2
    ks = jax.random.split(key, 8)
    s = 0.1
    return {
        # qkv 1x1 conv: (Cin, Cout) matmul layout (== torch weight[:, :, 0, 0].T)
        'qkv_w': s * jax.random.normal(ks[0], (dim, 3 * dim), jnp.float32),
        'qkv_b': s * jax.random.normal(ks[1], (3 * dim,), jnp.float32),
        # depthwise 3x3: (3*dim, 9) flattened kernel + bias
        'dw_w': s * jax.random.normal(ks[2], (3 * dim, 9), jnp.float32),
        'dw_b': s * jax.random.normal(ks[3], (3 * dim,), jnp.float32),
        # temperature: ones(num_heads,1,1)/sqrt(dim), stored flat per head
        'temperature': jnp.ones((num_heads,), jnp.float32) / math.sqrt(dim),
        # GMLP Linear: y = v @ gmlp_w + gmlp_b (== torch W.T)
        'gmlp_w': s * jax.random.normal(ks[4], (ws2, ws2), jnp.float32),
        'gmlp_b': s * jax.random.normal(ks[5], (ws2,), jnp.float32),
        # project_out 1x1 conv
        'proj_w': s * jax.random.normal(ks[6], (dim, dim), jnp.float32),
        'proj_b': s * jax.random.normal(ks[7], (dim,), jnp.float32),
    }


if __name__ == "__main__":
    key = jax.random.PRNGKey(0)
    configs = [
        # (B, dim, H, W, num_heads, window_size)
        (2, 8, 16, 16, 2, 8),   # window-aligned spatial dims
        (1, 8, 12, 12, 2, 8),   # exercises the check_image_size reflect-pad path
    ]
    for (B, dim, H, W, num_heads, window_size) in configs:
        key, kx, kp = jax.random.split(key, 3)
        x = jax.random.normal(kx, (B, dim, H, W), jnp.float32)
        params = init_params(kp, dim, num_heads, window_size)

        out = jax.block_until_ready(
            wattention_forward(x, params, num_heads, window_size))
        assert out.shape == (B, dim, H, W)

        ref = jax.block_until_ready(
            reference_forward(x, params, num_heads, window_size))
        np.testing.assert_allclose(np.asarray(out), np.asarray(ref),
                                   rtol=1e-2, atol=1e-2)
    print("KERNEL_OK")
</pallas_src>

<mosaic_0001>
module attributes {stable_mosaic.version = 11 : i64} {
  func.func @_qkv_dw_kernel(%arg0: i32, %arg1: memref<1x16x16x8xf32, #tpu.memory_space<vmem>>, %arg2: memref<8x24xf32, #tpu.memory_space<vmem>>, %arg3: memref<1x24xf32, #tpu.memory_space<vmem>>, %arg4: memref<9x24xf32, #tpu.memory_space<vmem>>, %arg5: memref<1x24xf32, #tpu.memory_space<vmem>>, %arg6: memref<1x16x16x24xbf16, #tpu.memory_space<vmem>>, %arg7: memref<18x18x24xf32, #tpu.memory_space<vmem>>) attributes {dimension_semantics = [#tpu.dimension_semantics<parallel>], iteration_bounds = array<i64: 2>, scalar_prefetch = 0 : i64, scratch_operands = 1 : i64, tpu.core_type = #tpu.core_type<tc>, window_params = [{transform_indices = @transform_0, window_bounds = array<i64: 1, 16, 16, 8>}, {pipeline_mode = #tpu.pipeline_mode<synchronous>, transform_indices = @transform_1, window_bounds = array<i64: 8, 24>}, {pipeline_mode = #tpu.pipeline_mode<synchronous>, transform_indices = @transform_2, window_bounds = array<i64: 1, 24>}, {pipeline_mode = #tpu.pipeline_mode<synchronous>, transform_indices = @transform_3, window_bounds = array<i64: 9, 24>}, {pipeline_mode = #tpu.pipeline_mode<synchronous>, transform_indices = @transform_4, window_bounds = array<i64: 1, 24>}, {transform_indices = @transform_5, window_bounds = array<i64: 1, 16, 16, 24>}]} {
    %c0 = arith.constant 0 : index
    %c0_0 = arith.constant 0 : index
    %c0_1 = arith.constant 0 : index
    %c0_2 = arith.constant 0 : index
    %0 = vector.load %arg1[%c0, %c0_0, %c0_1, %c0_2] : memref<1x16x16x8xf32, #tpu.memory_space<vmem>>, vector<1x16x16x8xf32>
    %1 = vector.shape_cast %0 : vector<1x16x16x8xf32> to vector<16x16x8xf32>
    %2 = vector.shape_cast %1 : vector<16x16x8xf32> to vector<256x8xf32>
    %3 = arith.truncf %2 : vector<256x8xf32> to vector<256x8xbf16>
    %c0_3 = arith.constant 0 : index
    %c0_4 = arith.constant 0 : index
    %4 = vector.load %arg2[%c0_3, %c0_4] : memref<8x24xf32, #tpu.memory_space<vmem>>, vector<8x24xf32>
    %5 = arith.truncf %4 : vector<8x24xf32> to vector<8x24xbf16>
    %cst = arith.constant dense<0.000000e+00> : vector<256x24xf32>
    %6 = tpu.matmul %3, %5, %cst {dimension_numbers = #tpu.dot_dimension_numbers<[1], [0], [0], [1], [0, 0, 1, 1], [], []>} : vector<256x8xbf16>, vector<8x24xbf16>, vector<256x24xf32> -> vector<256x24xf32>
    %c0_5 = arith.constant 0 : index
    %c0_6 = arith.constant 0 : index
    %7 = vector.load %arg3[%c0_5, %c0_6] : memref<1x24xf32, #tpu.memory_space<vmem>>, vector<1x24xf32>
    %8 = vector.broadcast %7 : vector<1x24xf32> to vector<256x24xf32>
    %9 = arith.addf %6, %8 : vector<256x24xf32>
    %cst_7 = arith.constant 0.000000e+00 : f32
    %10 = vector.broadcast %cst_7 : f32 to vector<18x18x24xf32>
    %c0_8 = arith.constant 0 : index
    %c0_9 = arith.constant 0 : index
    %c0_10 = arith.constant 0 : index
    %11 = vector.load %arg7[%c0_8, %c0_9, %c0_10] : memref<18x18x24xf32, #tpu.memory_space<vmem>>, vector<18x18x24xf32>
    tpu.vector_store %arg7[%c0_8, %c0_9, %c0_10], %10 {strides = array<i32>} : memref<18x18x24xf32, #tpu.memory_space<vmem>>, vector<18x18x24xf32>,
    %12 = vector.shape_cast %9 : vector<256x24xf32> to vector<16x16x24xf32>
    %c1 = arith.constant 1 : index
    %c1_11 = arith.constant 1 : index
    %c0_12 = arith.constant 0 : index
    %13 = vector.load %arg7[%c1, %c1_11, %c0_12] : memref<18x18x24xf32, #tpu.memory_space<vmem>>, vector<16x16x24xf32>
    tpu.vector_store %arg7[%c1, %c1_11, %c0_12], %12 {strides = array<i32>} : memref<18x18x24xf32, #tpu.memory_space<vmem>>, vector<16x16x24xf32>,
    %c0_13 = arith.constant 0 : index
    %c0_14 = arith.constant 0 : index
    %14 = vector.load %arg4[%c0_13, %c0_14] : memref<9x24xf32, #tpu.memory_space<vmem>>, vector<9x24xf32>
    %c0_15 = arith.constant 0 : index
    %c0_16 = arith.constant 0 : index
    %c0_17 = arith.constant 0 : index
    %15 = vector.load %arg7[%c0_15, %c0_16, %c0_17] : memref<18x18x24xf32, #tpu.memory_space<vmem>>, vector<16x16x24xf32>
    %16 = vector.extract_strided_slice %14 {offsets = [0, 0], sizes = [1, 24], strides = [1, 1]} : vector<9x24xf32> to vector<1x24xf32>
    %17 = vector.shape_cast %16 : vector<1x24xf32> to vector<24xf32>
    %18 = vector.shape_cast %17 : vector<24xf32> to vector<1x1x24xf32>
    %19 = vector.broadcast %18 : vector<1x1x24xf32> to vector<16x16x24xf32>
    %20 = arith.mulf %15, %19 : vector<16x16x24xf32>
    %c0_18 = arith.constant 0 : index
    %c1_19 = arith.constant 1 : index
    %c0_20 = arith.constant 0 : index
    %21 = vector.load %arg7[%c0_18, %c1_19, %c0_20] : memref<18x18x24xf32, #tpu.memory_space<vmem>>, vector<16x16x24xf32>
    %22 = vector.extract_strided_slice %14 {offsets = [1, 0], sizes = [1, 24], strides = [1, 1]} : vector<9x24xf32> to vector<1x24xf32>
    %23 = vector.shape_cast %22 : vector<1x24xf32> to vector<24xf32>
    %24 = vector.shape_cast %23 : vector<24xf32> to vector<1x1x24xf32>
    %25 = vector.broadcast %24 : vector<1x1x24xf32> to vector<16x16x24xf32>
    %26 = arith.mulf %21, %25 : vector<16x16x24xf32>
    %27 = arith.addf %20, %26 : vector<16x16x24xf32>
    %c0_21 = arith.constant 0 : index
    %c2 = arith.constant 2 : index
    %c0_22 = arith.constant 0 : index
    %28 = vector.load %arg7[%c0_21, %c2, %c0_22] : memref<18x18x24xf32, #tpu.memory_space<vmem>>, vector<16x16x24xf32>
    %29 = vector.extract_strided_slice %14 {offsets = [2, 0], sizes = [1, 24], strides = [1, 1]} : vector<9x24xf32> to vector<1x24xf32>
    %30 = vector.shape_cast %29 : vector<1x24xf32> to vector<24xf32>
    %31 = vector.shape_cast %30 : vector<24xf32> to vector<1x1x24xf32>
    %32 = vector.broadcast %31 : vector<1x1x24xf32> to vector<16x16x24xf32>
    %33 = arith.mulf %28, %32 : vector<16x16x24xf32>
    %34 = arith.addf %27, %33 : vector<16x16x24xf32>
    %c1_23 = arith.constant 1 : index
    %c0_24 = arith.constant 0 : index
    %c0_25 = arith.constant 0 : index
    %35 = vector.load %arg7[%c1_23, %c0_24, %c0_25] : memref<18x18x24xf32, #tpu.memory_space<vmem>>, vector<16x16x24xf32>
    %36 = vector.extract_strided_slice %14 {offsets = [3, 0], sizes = [1, 24], strides = [1, 1]} : vector<9x24xf32> to vector<1x24xf32>
    %37 = vector.shape_cast %36 : vector<1x24xf32> to vector<24xf32>
    %38 = vector.shape_cast %37 : vector<24xf32> to vector<1x1x24xf32>
    %39 = vector.broadcast %38 : vector<1x1x24xf32> to vector<16x16x24xf32>
    %40 = arith.mulf %35, %39 : vector<16x16x24xf32>
    %41 = arith.addf %34, %40 : vector<16x16x24xf32>
    %c1_26 = arith.constant 1 : index
    %c1_27 = arith.constant 1 : index
    %c0_28 = arith.constant 0 : index
    %42 = vector.load %arg7[%c1_26, %c1_27, %c0_28] : memref<18x18x24xf32, #tpu.memory_space<vmem>>, vector<16x16x24xf32>
    %43 = vector.extract_strided_slice %14 {offsets = [4, 0], sizes = [1, 24], strides = [1, 1]} : vector<9x24xf32> to vector<1x24xf32>
    %44 = vector.shape_cast %43 : vector<1x24xf32> to vector<24xf32>
    %45 = vector.shape_cast %44 : vector<24xf32> to vector<1x1x24xf32>
    %46 = vector.broadcast %45 : vector<1x1x24xf32> to vector<16x16x24xf32>
    %47 = arith.mulf %42, %46 : vector<16x16x24xf32>
    %48 = arith.addf %41, %47 : vector<16x16x24xf32>
    %c1_29 = arith.constant 1 : index
    %c2_30 = arith.constant 2 : index
    %c0_31 = arith.constant 0 : index
    %49 = vector.load %arg7[%c1_29, %c2_30, %c0_31] : memref<18x18x24xf32, #tpu.memory_space<vmem>>, vector<16x16x24xf32>
    %50 = vector.extract_strided_slice %14 {offsets = [5, 0], sizes = [1, 24], strides = [1, 1]} : vector<9x24xf32> to vector<1x24xf32>
    %51 = vector.shape_cast %50 : vector<1x24xf32> to vector<24xf32>
    %52 = vector.shape_cast %51 : vector<24xf32> to vector<1x1x24xf32>
    %53 = vector.broadcast %52 : vector<1x1x24xf32> to vector<16x16x24xf32>
    %54 = arith.mulf %49, %53 : vector<16x16x24xf32>
    %55 = arith.addf %48, %54 : vector<16x16x24xf32>
    %c2_32 = arith.constant 2 : index
    %c0_33 = arith.constant 0 : index
    %c0_34 = arith.constant 0 : index
    %56 = vector.load %arg7[%c2_32, %c0_33, %c0_34] : memref<18x18x24xf32, #tpu.memory_space<vmem>>, vector<16x16x24xf32>
    %57 = vector.extract_strided_slice %14 {offsets = [6, 0], sizes = [1, 24], strides = [1, 1]} : vector<9x24xf32> to vector<1x24xf32>
    %58 = vector.shape_cast %57 : vector<1x24xf32> to vector<24xf32>
    %59 = vector.shape_cast %58 : vector<24xf32> to vector<1x1x24xf32>
    %60 = vector.broadcast %59 : vector<1x1x24xf32> to vector<16x16x24xf32>
    %61 = arith.mulf %56, %60 : vector<16x16x24xf32>
    %62 = arith.addf %55, %61 : vector<16x16x24xf32>
    %c2_35 = arith.constant 2 : index
    %c1_36 = arith.constant 1 : index
    %c0_37 = arith.constant 0 : index
    %63 = vector.load %arg7[%c2_35, %c1_36, %c0_37] : memref<18x18x24xf32, #tpu.memory_space<vmem>>, vector<16x16x24xf32>
    %64 = vector.extract_strided_slice %14 {offsets = [7, 0], sizes = [1, 24], strides = [1, 1]} : vector<9x24xf32> to vector<1x24xf32>
    %65 = vector.shape_cast %64 : vector<1x24xf32> to vector<24xf32>
    %66 = vector.shape_cast %65 : vector<24xf32> to vector<1x1x24xf32>
    %67 = vector.broadcast %66 : vector<1x1x24xf32> to vector<16x16x24xf32>
    %68 = arith.mulf %63, %67 : vector<16x16x24xf32>
    %69 = arith.addf %62, %68 : vector<16x16x24xf32>
    %c2_38 = arith.constant 2 : index
    %c2_39 = arith.constant 2 : index
    %c0_40 = arith.constant 0 : index
    %70 = vector.load %arg7[%c2_38, %c2_39, %c0_40] : memref<18x18x24xf32, #tpu.memory_space<vmem>>, vector<16x16x24xf32>
    %71 = vector.extract_strided_slice %14 {offsets = [8, 0], sizes = [1, 24], strides = [1, 1]} : vector<9x24xf32> to vector<1x24xf32>
    %72 = vector.shape_cast %71 : vector<1x24xf32> to vector<24xf32>
    %73 = vector.shape_cast %72 : vector<24xf32> to vector<1x1x24xf32>
    %74 = vector.broadcast %73 : vector<1x1x24xf32> to vector<16x16x24xf32>
    %75 = arith.mulf %70, %74 : vector<16x16x24xf32>
    %76 = arith.addf %69, %75 : vector<16x16x24xf32>
    %c0_41 = arith.constant 0 : index
    %c0_42 = arith.constant 0 : index
    %77 = vector.load %arg5[%c0_41, %c0_42] : memref<1x24xf32, #tpu.memory_space<vmem>>, vector<1x24xf32>
    %78 = vector.shape_cast %77 : vector<1x24xf32> to vector<1x1x24xf32>
    %79 = vector.broadcast %78 : vector<1x1x24xf32> to vector<16x16x24xf32>
    %80 = arith.addf %76, %79 : vector<16x16x24xf32>
    %81 = arith.truncf %80 : vector<16x16x24xf32> to vector<16x16x24xbf16>
    %c0_43 = arith.constant 0 : index
    %c0_44 = arith.constant 0 : index
    %c0_45 = arith.constant 0 : index
    %c0_46 = arith.constant 0 : index
    %82 = vector.load %arg6[%c0_43, %c0_44, %c0_45, %c0_46] : memref<1x16x16x24xbf16, #tpu.memory_space<vmem>>, vector<1x16x16x24xbf16>
    %83 = vector.shape_cast %82 : vector<1x16x16x24xbf16> to vector<16x16x24xbf16>
    %84 = vector.shape_cast %81 : vector<16x16x24xbf16> to vector<1x16x16x24xbf16>
    tpu.vector_store %arg6[%c0_43, %c0_44, %c0_45, %c0_46], %84 {strides = array<i32>} : memref<1x16x16x24xbf16, #tpu.memory_space<vmem>>, vector<1x16x16x24xbf16>,
    return
  }
  func.func @transform_0(%arg0: i32) -> (i32, i32, i32, i32) {
    %c0_i32 = arith.constant 0 : i32
    %c0_i32_0 = arith.constant 0 : i32
    %c0_i32_1 = arith.constant 0 : i32
    %c0_i32_2 = arith.constant 0 : i32
    return %arg0, %c0_i32, %c0_i32_0, %c0_i32_1 : i32, i32, i32, i32
  }
  func.func @transform_1(%arg0: i32) -> (i32, i32) {
    %c0_i32 = arith.constant 0 : i32
    %c0_i32_0 = arith.constant 0 : i32
    %c0_i32_1 = arith.constant 0 : i32
    return %c0_i32, %c0_i32_0 : i32, i32
  }
  func.func @transform_2(%arg0: i32) -> (i32, i32) {
    %c0_i32 = arith.constant 0 : i32
    %c0_i32_0 = arith.constant 0 : i32
    %c0_i32_1 = arith.constant 0 : i32
    return %c0_i32, %c0_i32_0 : i32, i32
  }
  func.func @transform_3(%arg0: i32) -> (i32, i32) {
    %c0_i32 = arith.constant 0 : i32
    %c0_i32_0 = arith.constant 0 : i32
    %c0_i32_1 = arith.constant 0 : i32
    return %c0_i32, %c0_i32_0 : i32, i32
  }
  func.func @transform_4(%arg0: i32) -> (i32, i32) {
    %c0_i32 = arith.constant 0 : i32
    %c0_i32_0 = arith.constant 0 : i32
    %c0_i32_1 = arith.constant 0 : i32
    return %c0_i32, %c0_i32_0 : i32, i32
  }
  func.func @transform_5(%arg0: i32) -> (i32, i32, i32, i32) {
    %c0_i32 = arith.constant 0 : i32
    %c0_i32_0 = arith.constant 0 : i32
    %c0_i32_1 = arith.constant 0 : i32
    %c0_i32_2 = arith.constant 0 : i32
    return %arg0, %c0_i32, %c0_i32_0, %c0_i32_1 : i32, i32, i32, i32
  }
}

</mosaic_0001>

<llo_original>
// kernel: tpu_custom_call.1
$region0: #{tpu_custom_call.1}
  #allocation0 [shape = 'u32[]', space=smem, size = 0x4, offset = 0x4, fixed_abs, tag = 'smem constant byte address 0x4 - core index']
  #allocation1 [shape = 'u32[144,128]{1,0:T(1,128)}', space=vmem, size = 0x12000, scoped, tag = 'internal scratch']
  #allocation2 [shape = 'f32[18,18,24]{2,1,0:T(8,128)}', space=vmem, size = 0x36000, scoped, tag = 'scratch operand']
  %s0 = inlined_call_operand.vmem [shape: f32[2,16,16,8], index: 0, kind: input, shape index: {}]
  %s1 = inlined_call_operand.vmem [shape: f32[8,24], index: 1, kind: input, shape index: {}]
  %s2 = inlined_call_operand.vmem [shape: f32[1,24], index: 2, kind: input, shape index: {}]
  %s3 = inlined_call_operand.vmem [shape: f32[9,24], index: 3, kind: input, shape index: {}]
  %s4 = inlined_call_operand.vmem [shape: f32[1,24], index: 4, kind: input, shape index: {}]
  %s5 = inlined_call_operand.hbm [shape: bf16[2,16,16,24], index: 5, kind: output, shape index: {}]
  %s6 = sld [smem:[#allocation0]]
  $region53: #{tpu_custom_call.1} parent=0
    _
  %s8 = ssub.s32 1, %s6
  %s9 = scalar_select 0, %s8, %s6
  $region1: #{tpu_custom_call.1} parent=0
    #allocation3 [shape = 'u8[131072]{0}', space=vmem, size = 0x20000, scoped, tag = 'output window, operand 0']
    #allocation4 [shape = 's32[2]{0}', space=sflag, size = 0x8, scoped, tag = 'scoped memory for tpu_custom_call.1']
    %10 = vsyncpa [#allocation4], 0
    %s11 = scalar_lea.sflag [#allocation4], 1
    %12 = vsyncpa %s11, 0
    loop: start=0, step=1, limit=4
    $region2: #{tpu_custom_call.1} parent=1 // loop_pre_header
      _
    $region3: #{tpu_custom_call.1} parent=1 // loop_header
      %s14 = sphi 0, %s18
      %p15 = scmp.ge.s32.totalorder %s14, 4
      %s24 = sphi 0, %s26
      %s27 = sphi 0, %s24
      %s28 = sphi 0, %s27
      %s44 = sphi 0, %s28
      %s48 = sphi 0, %s48
      %s50 = sphi 0, %s48
      %s51 = sphi 0, %s50
      %s65 = sphi 0, %s51
      %s69 = sphi 0, %s69
      %s71 = sphi 0, %s69
      %s72 = sphi 0, %s71
      %s86 = sphi 0, %s72
      %s90 = sphi 0, %s90
      %s92 = sphi 0, %s90
      %s93 = sphi 0, %s92
      %s107 = sphi 0, %s93
      %s111 = sphi 0, %s111
      %s113 = sphi 0, %s111
      %s114 = sphi 0, %s113
      %s128 = sphi 0, %s114
      %s134 = sphi 0, %s136
      %s137 = sphi 0, %s134
      %s138 = sphi 0, %s137
      %s154 = sphi 0, %s138
    $region4: #{tpu_custom_call.1} parent=1 // loop_header_branch
      %17 = sbr.rel (%p15) target = $region8
    $region5: #{tpu_custom_call.1} parent=1 // loop_body
      %s19 = ssub.s32 %s14, 1
      %s20 = ssub.s32 %s14, 2
      %s21 = sadd.s32 %s14, 1
      %s22 = ssub.s32 %s14, %s21
      %p23 = scmp.eq.s32.totalorder %s22, 0
      %s25 = sadd.s32 %s24, 1
      %s26 = scalar_select %p23, %s24, %s25
      %p29 = pneg %p23
      %p30 = scmp.eq.s32.totalorder %s14, 1
      %p31 = por %p29, %p30
      %p32 = scmp.ne.s32.totalorder %s24, %s27
      %p33 = scmp.eq.s32.totalorder %s14, 0
      %p34 = por %p32, %p33
      %p35 = scmp.ne.s32.totalorder %s24, %s27
      %p36 = scmp.eq.s32.totalorder %s19, 1
      %p37 = por %p35, %p36
      %p38 = scmp.ne.s32.totalorder %s27, %s28
      %p39 = scmp.eq.s32.totalorder %s19, 0
      %p40 = por %p38, %p39
      %p41 = scmp.ne.s32.totalorder %s27, %s28
      %p42 = scmp.eq.s32.totalorder %s20, 1
      %p43 = por %p41, %p42
      %p45 = scmp.ne.s32.totalorder %s28, %s44
      %p46 = scmp.eq.s32.totalorder %s20, 0
      %p47 = por %p45, %p46
      %s49 = sadd.s32 %s48, 1
      %p52 = scmp.eq.s32.totalorder %s14, 1
      %p53 = scmp.ne.s32.totalorder %s48, %s50
      %p54 = scmp.eq.s32.totalorder %s14, 0
      %p55 = por %p53, %p54
      %p56 = scmp.ne.s32.totalorder %s48, %s50
      %p57 = scmp.eq.s32.totalorder %s19, 1
      %p58 = por %p56, %p57
      %p59 = scmp.ne.s32.totalorder %s50, %s51
      %p60 = scmp.eq.s32.totalorder %s19, 0
      %p61 = por %p59, %p60
      %p62 = scmp.ne.s32.totalorder %s50, %s51
      %p63 = scmp.eq.s32.totalorder %s20, 1
      %p64 = por %p62, %p63
      %p66 = scmp.ne.s32.totalorder %s51, %s65
      %p67 = scmp.eq.s32.totalorder %s20, 0
      %p68 = por %p66, %p67
      %s70 = sadd.s32 %s69, 1
      %p73 = scmp.eq.s32.totalorder %s14, 1
      %p74 = scmp.ne.s32.totalorder %s69, %s71
      %p75 = scmp.eq.s32.totalorder %s14, 0
      %p76 = por %p74, %p75
      %p77 = scmp.ne.s32.totalorder %s69, %s71
      %p78 = scmp.eq.s32.totalorder %s19, 1
      %p79 = por %p77, %p78
      %p80 = scmp.ne.s32.totalorder %s71, %s72
      %p81 = scmp.eq.s32.totalorder %s19, 0
      %p82 = por %p80, %p81
      %p83 = scmp.ne.s32.totalorder %s71, %s72
      %p84 = scmp.eq.s32.totalorder %s20, 1
      %p85 = por %p83, %p84
      %p87 = scmp.ne.s32.totalorder %s72, %s86
      %p88 = scmp.eq.s32.totalorder %s20, 0
      %p89 = por %p87, %p88
      %s91 = sadd.s32 %s90, 1
      %p94 = scmp.eq.s32.totalorder %s14, 1
      %p95 = scmp.ne.s32.totalorder %s90, %s92
      %p96 = scmp.eq.s32.totalorder %s14, 0
      %p97 = por %p95, %p96
      %p98 = scmp.ne.s32.totalorder %s90, %s92
      %p99 = scmp.eq.s32.totalorder %s19, 1
      %p100 = por %p98, %p99
      %p101 = scmp.ne.s32.totalorder %s92, %s93
      %p102 = scmp.eq.s32.totalorder %s19, 0
      %p103 = por %p101, %p102
      %p104 = scmp.ne.s32.totalorder %s92, %s93
      %p105 = scmp.eq.s32.totalorder %s20, 1
      %p106 = por %p104, %p105
      %p108 = scmp.ne.s32.totalorder %s93, %s107
      %p109 = scmp.eq.s32.totalorder %s20, 0
      %p110 = por %p108, %p109
      %s112 = sadd.s32 %s111, 1
      %p115 = scmp.eq.s32.totalorder %s14, 1
      %p116 = scmp.ne.s32.totalorder %s111, %s113
      %p117 = scmp.eq.s32.totalorder %s14, 0
      %p118 = por %p116, %p117
      %p119 = scmp.ne.s32.totalorder %s111, %s113
      %p120 = scmp.eq.s32.totalorder %s19, 1
      %p121 = por %p119, %p120
      %p122 = scmp.ne.s32.totalorder %s113, %s114
      %p123 = scmp.eq.s32.totalorder %s19, 0
      %p124 = por %p122, %p123
      %p125 = scmp.ne.s32.totalorder %s113, %s114
      %p126 = scmp.eq.s32.totalorder %s20, 1
      %p127 = por %p125, %p126
      %p129 = scmp.ne.s32.totalorder %s114, %s128
      %p130 = scmp.eq.s32.totalorder %s20, 0
      %p131 = por %p129, %p130
      %s132 = ssub.s32 %s14, %s21
      %p133 = scmp.eq.s32.totalorder %s132, 0
      %s135 = sadd.s32 %s134, 1
      %s136 = scalar_select %p133, %s134, %s135
      %p139 = pneg %p133
      %p140 = scmp.eq.s32.totalorder %s14, 1
      %p141 = por %p139, %p140
      %p142 = scmp.ne.s32.totalorder %s134, %s137
      %p143 = scmp.eq.s32.totalorder %s14, 0
      %p144 = por %p142, %p143
      %p145 = scmp.ne.s32.totalorder %s134, %s137
      %p146 = scmp.eq.s32.totalorder %s19, 1
      %p147 = por %p145, %p146
      %p148 = scmp.ne.s32.totalorder %s137, %s138
      %p149 = scmp.eq.s32.totalorder %s19, 0
      %p150 = por %p148, %p149
      %p151 = scmp.ne.s32.totalorder %s137, %s138
      %p152 = scmp.eq.s32.totalorder %s20, 1
      %p153 = por %p151, %p152
      %p155 = scmp.ne.s32.totalorder %s138, %s154
      %p156 = scmp.eq.s32.totalorder %s20, 0
      %p157 = por %p155, %p156
      %p158 = scmp.le.s32.totalorder 1, %s14
      %p159 = scmp.lt.s32.totalorder %s14, 3
      %p160 = pnand %p158, %p159
      %p161 = pneg %p160
      // Predicated region
      $region9: #{tpu_custom_call.1} parent=5 // pred_check
        _
      $region10: #{tpu_custom_call.1} parent=5 // pred_check_branch
        %163 = sbr.rel (%p160) target = $region12
      $region11: #{tpu_custom_call.1} parent=5 // pred_region
        %s164 = ssub.s32 %s14, 1
        // Predicated region
        $region13: #{tpu_custom_call.1} parent=11 // pred_check
          %p165 = pneg %p61
        $region14: #{tpu_custom_call.1} parent=11 // pred_check_branch
          %167 = sbr.rel (%p165) target = $region16
        $region15: #{tpu_custom_call.1} parent=11 // pred_region
          _
        $region16: #{tpu_custom_call.1} parent=11 // pred_fallthru
          _
        // Predicated region
        $region17: #{tpu_custom_call.1} parent=11 // pred_check
          %p168 = pneg %p82
        $region18: #{tpu_custom_call.1} parent=11 // pred_check_branch
          %170 = sbr.rel (%p168) target = $region20
        $region19: #{tpu_custom_call.1} parent=11 // pred_region
          _
        $region20: #{tpu_custom_call.1} parent=11 // pred_fallthru
          _
        // Predicated region
        $region21: #{tpu_custom_call.1} parent=11 // pred_check
          %p171 = pneg %p103
        $region22: #{tpu_custom_call.1} parent=11 // pred_check_branch
          %173 = sbr.rel (%p171) target = $region24
        $region23: #{tpu_custom_call.1} parent=11 // pred_region
          _
        $region24: #{tpu_custom_call.1} parent=11 // pred_fallthru
          _
        // Predicated region
        $region25: #{tpu_custom_call.1} parent=11 // pred_check
          %p174 = pneg %p124
        $region26: #{tpu_custom_call.1} parent=11 // pred_check_branch
          %176 = sbr.rel (%p174) target = $region28
        $region27: #{tpu_custom_call.1} parent=11 // pred_region
          _
        $region28: #{tpu_custom_call.1} parent=11 // pred_fallthru
          _
      $region12: #{tpu_custom_call.1} parent=5 // pred_fallthru
        _
      %p177 = scmp.lt.s32.totalorder %s14, 2
      // Predicated region
      $region29: #{tpu_custom_call.1} parent=5 // pred_check
        %p178 = pneg %p177
      $region30: #{tpu_custom_call.1} parent=5 // pred_check_branch
        %180 = sbr.rel (%p178) target = $region32
      $region31: #{tpu_custom_call.1} parent=5 // pred_region
        // Predicated region
        $region33: #{tpu_custom_call.1} parent=31 // pred_check
          %p181 = pneg %p34
        $region34: #{tpu_custom_call.1} parent=31 // pred_check_branch
          %183 = sbr.rel (%p181) target = $region36
        $region35: #{tpu_custom_call.1} parent=31 // pred_region
          %p184 = scmp.lt.s32.totalorder %s14, 1
          %s185 = scalar_select %p184, %s14, 1
          %s186 = smul.addr %s185, 32
          %s187 = smul.addr %s186, 8
          %s188 = scalar_lea.vmem %s0, %s187
        $region36: #{tpu_custom_call.1} parent=31 // pred_fallthru
          _
      $region32: #{tpu_custom_call.1} parent=5 // pred_fallthru
        _
      %p189 = scmp.le.s32.totalorder 1, %s14
      %p190 = scmp.lt.s32.totalorder %s14, 3
      %p191 = pnand %p189, %p190
      %p192 = pneg %p191
      // Predicated region
      $region37: #{tpu_custom_call.1} parent=5 // pred_check
        _
      $region38: #{tpu_custom_call.1} parent=5 // pred_check_branch
        %194 = sbr.rel (%p191) target = $region40
      $region39: #{tpu_custom_call.1} parent=5 // pred_region
        %s195 = ssub.s32 %s14, 1
        %p196 = scmp.lt.s32.totalorder %s19, 1
        %s197 = scalar_select %p196, %s19, 1
        %s198 = smul.addr %s197, 32
        %s199 = smul.addr %s198, 8
        %s200 = scalar_lea.vmem %s0, %s199
        %p201 = pneg %p40
        %p202 = pneg %p37
        %p203 = pneg %p61
        %p204 = pneg %p58
        %p205 = pneg %p82
        %p206 = pneg %p79
        %p207 = pneg %p103
        %p208 = pneg %p100
        %p209 = pneg %p124
        %p210 = pneg %p121
        %p211 = pneg %p150
        %p212 = pneg %p147
        %s213 = sand.u32 %s137, 1
        %s214 = scalar_lea.sflag [#allocation4], %s213
        %s215 = sand.u32 %s137, 1
        %s216 = smul.addr %s215, 128
        %s217 = scalar_lea.vmem [#allocation3], %s216
        %p218 = scmp.lt.s32.totalorder %s19, 1
        %s219 = scalar_select %p218, %s19, 1
        %s220 = smul.addr %s219, 32
        %s221 = smul.addr %s220, 8
        %s222 = scalar_lea.vmem %s0, %s221
        %v224 = vld [vmem:[%s222] sm:$0xff]
        %v225 = vld [vmem:[%s222 + $0x8] sm:$0xff]
        %v226 = vld [vmem:[%s222 + $0x10] sm:$0xff]
        %v227 = vld [vmem:[%s222 + $0x18] sm:$0xff]
        %v228 = vld [vmem:[%s222 + $0x20] sm:$0xff]
        %v229 = vld [vmem:[%s222 + $0x28] sm:$0xff]
        %v230 = vld [vmem:[%s222 + $0x30] sm:$0xff]
        %v231 = vld [vmem:[%s222 + $0x38] sm:$0xff]
        %v232 = vld [vmem:[%s222 + $0x40] sm:$0xff]
        %v233 = vld [vmem:[%s222 + $0x48] sm:$0xff]
        %v234 = vld [vmem:[%s222 + $0x50] sm:$0xff]
        %v235 = vld [vmem:[%s222 + $0x58] sm:$0xff]
        %v236 = vld [vmem:[%s222 + $0x60] sm:$0xff]
        %v237 = vld [vmem:[%s222 + $0x68] sm:$0xff]
        %v238 = vld [vmem:[%s222 + $0x70] sm:$0xff]
        %v239 = vld [vmem:[%s222 + $0x78] sm:$0xff]
        %v240 = vld [vmem:[%s222 + $0x80] sm:$0xff]
        %v241 = vld [vmem:[%s222 + $0x88] sm:$0xff]
        %v242 = vld [vmem:[%s222 + $0x90] sm:$0xff]
        %v243 = vld [vmem:[%s222 + $0x98] sm:$0xff]
        %v244 = vld [vmem:[%s222 + $0xa0] sm:$0xff]
        %v245 = vld [vmem:[%s222 + $0xa8] sm:$0xff]
        %v246 = vld [vmem:[%s222 + $0xb0] sm:$0xff]
        %v247 = vld [vmem:[%s222 + $0xb8] sm:$0xff]
        %v248 = vld [vmem:[%s222 + $0xc0] sm:$0xff]
        %v249 = vld [vmem:[%s222 + $0xc8] sm:$0xff]
        %v250 = vld [vmem:[%s222 + $0xd0] sm:$0xff]
        %v251 = vld [vmem:[%s222 + $0xd8] sm:$0xff]
        %v252 = vld [vmem:[%s222 + $0xe0] sm:$0xff]
        %v253 = vld [vmem:[%s222 + $0xe8] sm:$0xff]
        %v254 = vld [vmem:[%s222 + $0xf0] sm:$0xff]
        %v255 = vld [vmem:[%s222 + $0xf8] sm:$0xff]
        %v256 = vpack.c.bf16 %v225, %v224
        %v257 = vpack.c.bf16 %v227, %v226
        %v258 = vpack.c.bf16 %v229, %v228
        %v259 = vpack.c.bf16 %v231, %v230
        %v260 = vpack.c.bf16 %v233, %v232
        %v261 = vpack.c.bf16 %v235, %v234
        %v262 = vpack.c.bf16 %v237, %v236
        %v263 = vpack.c.bf16 %v239, %v238
        %v264 = vpack.c.bf16 %v241, %v240
        %v265 = vpack.c.bf16 %v243, %v242
        %v266 = vpack.c.bf16 %v245, %v244
        %v267 = vpack.c.bf16 %v247, %v246
        %v268 = vpack.c.bf16 %v249, %v248
        %v269 = vpack.c.bf16 %v251, %v250
        %v270 = vpack.c.bf16 %v253, %v252
        %v271 = vpack.c.bf16 %v255, %v254
        %v272 = vld [vmem:[%s1] sm:$0xff]
        %v273 = vpack.c.bf16 %v272, %v272
        %v274 = vld [vmem:[%s2] sm:$0x1]
        %v276 = vlaneseq
        %v277 = vshrl.u32 %v276, 7
        %v278 = vsub.s32 0, %v277
        %v279 = vrot.slane %v274, %v278
        %vm281 = vcmask 64512
        %v283 = vsel %vm281, %v256, 0
        %v286 = vsel %vm281, %v257, 0
        %v289 = vsel %vm281, %v258, 0
        %v292 = vsel %vm281, %v259, 0
        %v295 = vsel %vm281, %v260, 0
        %v298 = vsel %vm281, %v261, 0
        %v301 = vsel %vm281, %v262, 0
        %v304 = vsel %vm281, %v263, 0
        %v307 = vsel %vm281, %v264, 0
        %v310 = vsel %vm281, %v265, 0
        %v313 = vsel %vm281, %v266, 0
        %v316 = vsel %vm281, %v267, 0
        %v319 = vsel %vm281, %v268, 0
        %v322 = vsel %vm281, %v269, 0
        %v325 = vsel %vm281, %v270, 0
        %v328 = vsel %vm281, %v271, 0
        %vm330 = vcmask 1043456
        %v332 = vsel %vm330, %v273, 0
        %334 = vmatprep.subr.bf16.mxu0 0
        %335 = vmatpush1.bf16.msra.mxu0 0
        %336 = vmatprep.subr.bf16.mxu0 0
        %337 = vmatpush1.bf16.msra.mxu0 0
        %338 = vmatprep.subr.bf16.mxu0 0
        %339 = vmatpush1.bf16.msra.mxu0 0
        %340 = vmatprep.subr.bf16.mxu0 0
        %341 = vmatpush1.bf16.msra.mxu0 0
        %342 = vmatprep.subr.bf16.mxu0 0
        %343 = vmatpush1.bf16.msra.mxu0 0
        %344 = vmatprep.subr.bf16.mxu0 0
        %345 = vmatpush1.bf16.msra.mxu0 0
        %346 = vmatprep.subr.bf16.mxu0 0
        %347 = vmatpush1.bf16.msra.mxu0 0
        %348 = vmatprep.subr.bf16.mxu0 0
        %349 = vmatpush1.bf16.msra.mxu0 %v332
        %350 = vmatprep.subr.bf16.mxu0 0
        %351 = vmatpush2.bf16.msra.mxu0 0
        %352 = vmatprep.subr.bf16.mxu0 0
        %353 = vmatpush2.bf16.msra.mxu0 0
        %354 = vmatprep.subr.bf16.mxu0 0
        %355 = vmatpush2.bf16.msra.mxu0 0
        %356 = vmatprep.subr.bf16.mxu0 0
        %357 = vmatpush2.bf16.msra.mxu0 0
        %358 = vmatprep.subr.bf16.mxu0 0
        %359 = vmatpush2.bf16.msra.mxu0 0
        %360 = vmatprep.subr.bf16.mxu0 0
        %361 = vmatpush2.bf16.msra.mxu0 0
        %362 = vmatprep.subr.bf16.mxu0 0
        %363 = vmatpush2.bf16.msra.mxu0 0
        %364 = vmatprep.subr.bf16.mxu0 0
        %365 = vmatpush2.bf16.msra.mxu0 0
        %366 = vmatprep.mubr.bf16.mxu0 0
        %367 = vmatmul.mubr.bf16.gmra.mxu0 %v283
        %v368 = vpop.f32.mrf.mxu0
        %v369 = vadd.f32 %v279, %v368
        %v370 = vpop.f32.mrf.mxu0
        %v371 = vpop.f32.mrf.mxu0
        %v372 = vadd.f32 %v279, %v371
        %v373 = vpop.f32.mrf.mxu0
        %374 = vmatprep.mubr.bf16.mxu0 0
        %375 = vmatmul.mubr.bf16.gmra.mxu0 %v286
        %v376 = vpop.f32.mrf.mxu0
        %v377 = vadd.f32 %v279, %v376
        %v378 = vpop.f32.mrf.mxu0
        %v379 = vpop.f32.mrf.mxu0
        %v380 = vadd.f32 %v279, %v379
        %v381 = vpop.f32.mrf.mxu0
        %382 = vmatprep.mubr.bf16.mxu0 0
        %383 = vmatmul.mubr.bf16.gmra.mxu0 %v289
        %v384 = vpop.f32.mrf.mxu0
        %v385 = vadd.f32 %v279, %v384
        %v386 = vpop.f32.mrf.mxu0
        %v387 = vpop.f32.mrf.mxu0
        %v388 = vadd.f32 %v279, %v387
        %v389 = vpop.f32.mrf.mxu0
        %390 = vmatprep.mubr.bf16.mxu0 0
        %391 = vmatmul.mubr.bf16.gmra.mxu0 %v292
        %v392 = vpop.f32.mrf.mxu0
        %v393 = vadd.f32 %v279, %v392
        %v394 = vpop.f32.mrf.mxu0
        %v395 = vpop.f32.mrf.mxu0
        %v396 = vadd.f32 %v279, %v395
        %v397 = vpop.f32.mrf.mxu0
        %398 = vmatprep.mubr.bf16.mxu0 0
        %399 = vmatmul.mubr.bf16.gmra.mxu0 %v295
        %v400 = vpop.f32.mrf.mxu0
        %v401 = vadd.f32 %v279, %v400
        %v402 = vpop.f32.mrf.mxu0
        %v403 = vpop.f32.mrf.mxu0
        %v404 = vadd.f32 %v279, %v403
        %v405 = vpop.f32.mrf.mxu0
        %406 = vmatprep.mubr.bf16.mxu0 0
        %407 = vmatmul.mubr.bf16.gmra.mxu0 %v298
        %v408 = vpop.f32.mrf.mxu0
        %v409 = vadd.f32 %v279, %v408
        %v410 = vpop.f32.mrf.mxu0
        %v411 = vpop.f32.mrf.mxu0
        %v412 = vadd.f32 %v279, %v411
        %v413 = vpop.f32.mrf.mxu0
        %414 = vmatprep.mubr.bf16.mxu0 0
        %415 = vmatmul.mubr.bf16.gmra.mxu0 %v301
        %v416 = vpop.f32.mrf.mxu0
        %v417 = vadd.f32 %v279, %v416
        %v418 = vpop.f32.mrf.mxu0
        %v419 = vpop.f32.mrf.mxu0
        %v420 = vadd.f32 %v279, %v419
        %v421 = vpop.f32.mrf.mxu0
        %422 = vmatprep.mubr.bf16.mxu0 0
        %423 = vmatmul.mubr.bf16.gmra.mxu0 %v304
        %v424 = vpop.f32.mrf.mxu0
        %v425 = vadd.f32 %v279, %v424
        %v426 = vpop.f32.mrf.mxu0
        %v427 = vpop.f32.mrf.mxu0
        %v428 = vadd.f32 %v279, %v427
        %v429 = vpop.f32.mrf.mxu0
        %430 = vmatprep.mubr.bf16.mxu0 0
        %431 = vmatmul.mubr.bf16.gmra.mxu0 %v307
        %v432 = vpop.f32.mrf.mxu0
        %v433 = vadd.f32 %v279, %v432
        %v434 = vpop.f32.mrf.mxu0
        %v435 = vpop.f32.mrf.mxu0
        %v436 = vadd.f32 %v279, %v435
        %v437 = vpop.f32.mrf.mxu0
        %438 = vmatprep.mubr.bf16.mxu0 0
        %439 = vmatmul.mubr.bf16.gmra.mxu0 %v310
        %v440 = vpop.f32.mrf.mxu0
        %v441 = vadd.f32 %v279, %v440
        %v442 = vpop.f32.mrf.mxu0
        %v443 = vpop.f32.mrf.mxu0
        %v444 = vadd.f32 %v279, %v443
        %v445 = vpop.f32.mrf.mxu0
        %446 = vmatprep.mubr.bf16.mxu0 0
        %447 = vmatmul.mubr.bf16.gmra.mxu0 %v313
        %v448 = vpop.f32.mrf.mxu0
        %v449 = vadd.f32 %v279, %v448
        %v450 = vpop.f32.mrf.mxu0
        %v451 = vpop.f32.mrf.mxu0
        %v452 = vadd.f32 %v279, %v451
        %v453 = vpop.f32.mrf.mxu0
        %454 = vmatprep.mubr.bf16.mxu0 0
        %455 = vmatmul.mubr.bf16.gmra.mxu0 %v316
        %v456 = vpop.f32.mrf.mxu0
        %v457 = vadd.f32 %v279, %v456
        %v458 = vpop.f32.mrf.mxu0
        %v459 = vpop.f32.mrf.mxu0
        %v460 = vadd.f32 %v279, %v459
        %v461 = vpop.f32.mrf.mxu0
        %462 = vmatprep.mubr.bf16.mxu0 0
        %463 = vmatmul.mubr.bf16.gmra.mxu0 %v319
        %v464 = vpop.f32.mrf.mxu0
        %v465 = vadd.f32 %v279, %v464
        %v466 = vpop.f32.mrf.mxu0
        %v467 = vpop.f32.mrf.mxu0
        %v468 = vadd.f32 %v279, %v467
        %v469 = vpop.f32.mrf.mxu0
        %470 = vmatprep.mubr.bf16.mxu0 0
        %471 = vmatmul.mubr.bf16.gmra.mxu0 %v322
        %v472 = vpop.f32.mrf.mxu0
        %v473 = vadd.f32 %v279, %v472
        %v474 = vpop.f32.mrf.mxu0
        %v475 = vpop.f32.mrf.mxu0
        %v476 = vadd.f32 %v279, %v475
        %v477 = vpop.f32.mrf.mxu0
        %478 = vmatprep.mubr.bf16.mxu0 0
        %479 = vmatmul.mubr.bf16.gmra.mxu0 %v325
        %v480 = vpop.f32.mrf.mxu0
        %v481 = vadd.f32 %v279, %v480
        %v482 = vpop.f32.mrf.mxu0
        %v483 = vpop.f32.mrf.mxu0
        %v484 = vadd.f32 %v279, %v483
        %v485 = vpop.f32.mrf.mxu0
        %486 = vmatprep.mubr.bf16.mxu0 0
        %487 = vmatmul.mubr.bf16.gmra.mxu0 %v328
        %v488 = vpop.f32.mrf.mxu0
        %v489 = vadd.f32 %v279, %v488
        %v490 = vpop.f32.mrf.mxu0
        %v491 = vpop.f32.mrf.mxu0
        %v492 = vadd.f32 %v279, %v491
        %v493 = vpop.f32.mrf.mxu0
        %494 = vdwg.mxu0
        %vm495 = vcmask 195584
        %496 = vst.msk [vmem:[#allocation2] sm:$0xff] %vm495, 0.0
        %497 = vst.msk [vmem:[#allocation2 + $0x8] sm:$0xff] %vm495, 0.0
        %vm498 = vcmask 189440
        %499 = vst.msk [vmem:[#allocation2 + $0x10] sm:$0x3] %vm498, 0.0
        %500 = vst.msk [vmem:[#allocation2 + $0x18] sm:$0xff] %vm495, 0.0
        %501 = vst.msk [vmem:[#allocation2 + $0x20] sm:$0xff] %vm495, 0.0
        %502 = vst.msk [vmem:[#allocation2 + $0x28] sm:$0x3] %vm498, 0.0
        %503 = vst.msk [vmem:[#allocation2 + $0x30] sm:$0xff] %vm495, 0.0
        %504 = vst.msk [vmem:[#allocation2 + $0x38] sm:$0xff] %vm495, 0.0
        %505 = vst.msk [vmem:[#allocation2 + $0x40] sm:$0x3] %vm498, 0.0
        %506 = vst.msk [vmem:[#allocation2 + $0x48] sm:$0xff] %vm495, 0.0
        %507 = vst.msk [vmem:[#allocation2 + $0x50] sm:$0xff] %vm495, 0.0
        %508 = vst.msk [vmem:[#allocation2 + $0x58] sm:$0x3] %vm498, 0.0
        %509 = vst.msk [vmem:[#allocation2 + $0x60] sm:$0xff] %vm495, 0.0
        %510 = vst.msk [vmem:[#allocation2 + $0x68] sm:$0xff] %vm495, 0.0
        %511 = vst.msk [vmem:[#allocation2 + $0x70] sm:$0x3] %vm498, 0.0
        %512 = vst.msk [vmem:[#allocation2 + $0x78] sm:$0xff] %vm495, 0.0
        %513 = vst.msk [vmem:[#allocation2 + $0x80] sm:$0xff] %vm495, 0.0
        %514 = vst.msk [vmem:[#allocation2 + $0x88] sm:$0x3] %vm498, 0.0
        %515 = vst.msk [vmem:[#allocation2 + $0x90] sm:$0xff] %vm495, 0.0
        %516 = vst.msk [vmem:[#allocation2 + $0x98] sm:$0xff] %vm495, 0.0
        %517 = vst.msk [vmem:[#allocation2 + $0xa0] sm:$0x3] %vm498, 0.0
        %518 = vst.msk [vmem:[#allocation2 + $0xa8] sm:$0xff] %vm495, 0.0
        %519 = vst.msk [vmem:[#allocation2 + $0xb0] sm:$0xff] %vm495, 0.0
        %520 = vst.msk [vmem:[#allocation2 + $0xb8] sm:$0x3] %vm498, 0.0
        %521 = vst.msk [vmem:[#allocation2 + $0xc0] sm:$0xff] %vm495, 0.0
        %522 = vst.msk [vmem:[#allocation2 + $0xc8] sm:$0xff] %vm495, 0.0
        %523 = vst.msk [vmem:[#allocation2 + $0xd0] sm:$0x3] %vm498, 0.0
        %524 = vst.msk [vmem:[#allocation2 + $0xd8] sm:$0xff] %vm495, 0.0
        %525 = vst.msk [vmem:[#allocation2 + $0xe0] sm:$0xff] %vm495, 0.0
        %526 = vst.msk [vmem:[#allocation2 + $0xe8] sm:$0x3] %vm498, 0.0
        %527 = vst.msk [vmem:[#allocation2 + $0xf0] sm:$0xff] %vm495, 0.0
        %528 = vst.msk [vmem:[#allocation2 + $0xf8] sm:$0xff] %vm495, 0.0
        %529 = vst.msk [vmem:[#allocation2 + $0x100] sm:$0x3] %vm498, 0.0
        %530 = vst.msk [vmem:[#allocation2 + $0x108] sm:$0xff] %vm495, 0.0
        %531 = vst.msk [vmem:[#allocation2 + $0x110] sm:$0xff] %vm495, 0.0
        %532 = vst.msk [vmem:[#allocation2 + $0x118] sm:$0x3] %vm498, 0.0
        %533 = vst.msk [vmem:[#allocation2 + $0x120] sm:$0xff] %vm495, 0.0
        %534 = vst.msk [vmem:[#allocation2 + $0x128] sm:$0xff] %vm495, 0.0
        %535 = vst.msk [vmem:[#allocation2 + $0x130] sm:$0x3] %vm498, 0.0
        %536 = vst.msk [vmem:[#allocation2 + $0x138] sm:$0xff] %vm495, 0.0
        %537 = vst.msk [vmem:[#allocation2 + $0x140] sm:$0xff] %vm495, 0.0
        %538 = vst.msk [vmem:[#allocation2 + $0x148] sm:$0x3] %vm498, 0.0
        %539 = vst.msk [vmem:[#allocation2 + $0x150] sm:$0xff] %vm495, 0.0
        %540 = vst.msk [vmem:[#allocation2 + $0x158] sm:$0xff] %vm495, 0.0
        %541 = vst.msk [vmem:[#allocation2 + $0x160] sm:$0x3] %vm498, 0.0
        %542 = vst.msk [vmem:[#allocation2 + $0x168] sm:$0xff] %vm495, 0.0
        %543 = vst.msk [vmem:[#allocation2 + $0x170] sm:$0xff] %vm495, 0.0
        %544 = vst.msk [vmem:[#allocation2 + $0x178] sm:$0x3] %vm498, 0.0
        %545 = vst.msk [vmem:[#allocation2 + $0x180] sm:$0xff] %vm495, 0.0
        %546 = vst.msk [vmem:[#allocation2 + $0x188] sm:$0xff] %vm495, 0.0
        %547 = vst.msk [vmem:[#allocation2 + $0x190] sm:$0x3] %vm498, 0.0
        %548 = vst.msk [vmem:[#allocation2 + $0x198] sm:$0xff] %vm495, 0.0
        %549 = vst.msk [vmem:[#allocation2 + $0x1a0] sm:$0xff] %vm495, 0.0
        %550 = vst.msk [vmem:[#allocation2 + $0x1a8] sm:$0x3] %vm498, 0.0
        %s551 = scalar_lea.vmem [#allocation2], 24
        %552 = vst.msk [vmem:[%s551 + $0x1] sm:$0xff] %vm495, %v369
        %553 = vst.msk [vmem:[%s551 + $0x9] sm:$0xff] %vm495, %v372
        %554 = vst.msk [vmem:[%s551 + $0x19] sm:$0xff] %vm495, %v377
        %555 = vst.msk [vmem:[%s551 + $0x21] sm:$0xff] %vm495, %v380
        %556 = vst.msk [vmem:[%s551 + $0x31] sm:$0xff] %vm495, %v385
        %557 = vst.msk [vmem:[%s551 + $0x39] sm:$0xff] %vm495, %v388
        %558 = vst.msk [vmem:[%s551 + $0x49] sm:$0xff] %vm495, %v393
        %559 = vst.msk [vmem:[%s551 + $0x51] sm:$0xff] %vm495, %v396
        %560 = vst.msk [vmem:[%s551 + $0x61] sm:$0xff] %vm495, %v401
        %561 = vst.msk [vmem:[%s551 + $0x69] sm:$0xff] %vm495, %v404
        %562 = vst.msk [vmem:[%s551 + $0x79] sm:$0xff] %vm495, %v409
        %563 = vst.msk [vmem:[%s551 + $0x81] sm:$0xff] %vm495, %v412
        %564 = vst.msk [vmem:[%s551 + $0x91] sm:$0xff] %vm495, %v417
        %565 = vst.msk [vmem:[%s551 + $0x99] sm:$0xff] %vm495, %v420
        %566 = vst.msk [vmem:[%s551 + $0xa9] sm:$0xff] %vm495, %v425
        %567 = vst.msk [vmem:[%s551 + $0xb1] sm:$0xff] %vm495, %v428
        %568 = vst.msk [vmem:[%s551 + $0xc1] sm:$0xff] %vm495, %v433
        %569 = vst.msk [vmem:[%s551 + $0xc9] sm:$0xff] %vm495, %v436
        %570 = vst.msk [vmem:[%s551 + $0xd9] sm:$0xff] %vm495, %v441
        %571 = vst.msk [vmem:[%s551 + $0xe1] sm:$0xff] %vm495, %v444
        %572 = vst.msk [vmem:[%s551 + $0xf1] sm:$0xff] %vm495, %v449
        %573 = vst.msk [vmem:[%s551 + $0xf9] sm:$0xff] %vm495, %v452
        %574 = vst.msk [vmem:[%s551 + $0x109] sm:$0xff] %vm495, %v457
        %575 = vst.msk [vmem:[%s551 + $0x111] sm:$0xff] %vm495, %v460
        %576 = vst.msk [vmem:[%s551 + $0x121] sm:$0xff] %vm495, %v465
        %577 = vst.msk [vmem:[%s551 + $0x129] sm:$0xff] %vm495, %v468
        %578 = vst.msk [vmem:[%s551 + $0x139] sm:$0xff] %vm495, %v473
        %579 = vst.msk [vmem:[%s551 + $0x141] sm:$0xff] %vm495, %v476
        %580 = vst.msk [vmem:[%s551 + $0x151] sm:$0xff] %vm495, %v481
        %581 = vst.msk [vmem:[%s551 + $0x159] sm:$0xff] %vm495, %v484
        %582 = vst.msk [vmem:[%s551 + $0x169] sm:$0xff] %vm495, %v489
        %583 = vst.msk [vmem:[%s551 + $0x171] sm:$0xff] %vm495, %v492
        %v584 = vld [vmem:[%s3] sm:$0xff]
        %v585 = vld [vmem:[%s3 + $0x8] sm:$0x1]
        %v586 = vld [vmem:[#allocation2] sm:$0xff]
        %v587 = vld [vmem:[#allocation2 + $0x8] sm:$0xff]
        %v588 = vld [vmem:[#allocation2 + $0x18] sm:$0xff]
        %v589 = vld [vmem:[#allocation2 + $0x20] sm:$0xff]
        %v590 = vld [vmem:[#allocation2 + $0x30] sm:$0xff]
        %v591 = vld [vmem:[#allocation2 + $0x38] sm:$0xff]
        %v592 = vld [vmem:[#allocation2 + $0x48] sm:$0xff]
        %v593 = vld [vmem:[#allocation2 + $0x50] sm:$0xff]
        %v594 = vld [vmem:[#allocation2 + $0x60] sm:$0xff]
        %v595 = vld [vmem:[#allocation2 + $0x68] sm:$0xff]
        %v596 = vld [vmem:[#allocation2 + $0x78] sm:$0xff]
        %v597 = vld [vmem:[#allocation2 + $0x80] sm:$0xff]
        %v598 = vld [vmem:[#allocation2 + $0x90] sm:$0xff]
        %v599 = vld [vmem:[#allocation2 + $0x98] sm:$0xff]
        %v600 = vld [vmem:[#allocation2 + $0xa8] sm:$0xff]
        %v601 = vld [vmem:[#allocation2 + $0xb0] sm:$0xff]
        %v602 = vld [vmem:[#allocation2 + $0xc0] sm:$0xff]
        %v603 = vld [vmem:[#allocation2 + $0xc8] sm:$0xff]
        %v604 = vld [vmem:[#allocation2 + $0xd8] sm:$0xff]
        %v605 = vld [vmem:[#allocation2 + $0xe0] sm:$0xff]
        %v606 = vld [vmem:[#allocation2 + $0xf0] sm:$0xff]
        %v607 = vld [vmem:[#allocation2 + $0xf8] sm:$0xff]
        %v608 = vld [vmem:[#allocation2 + $0x108] sm:$0xff]
        %v609 = vld [vmem:[#allocation2 + $0x110] sm:$0xff]
        %v610 = vld [vmem:[#allocation2 + $0x120] sm:$0xff]
        %v611 = vld [vmem:[#allocation2 + $0x128] sm:$0xff]
        %v612 = vld [vmem:[#allocation2 + $0x138] sm:$0xff]
        %v613 = vld [vmem:[#allocation2 + $0x140] sm:$0xff]
        %v614 = vld [vmem:[#allocation2 + $0x150] sm:$0xff]
        %v615 = vld [vmem:[#allocation2 + $0x158] sm:$0xff]
        %v616 = vld [vmem:[#allocation2 + $0x168] sm:$0xff]
        %v617 = vld [vmem:[#allocation2 + $0x170] sm:$0xff]
        %v618 = vlaneseq
        %v619 = vshrl.u32 %v618, 7
        %v620 = vsub.s32 0, %v619
        %v621 = vrot.slane %v584, %v620
        %v622 = vmul.f32 %v586, %v621
        %v623 = vmul.f32 %v587, %v621
        %v624 = vmul.f32 %v588, %v621
        %v625 = vmul.f32 %v589, %v621
        %v626 = vmul.f32 %v590, %v621
        %v627 = vmul.f32 %v591, %v621
        %v628 = vmul.f32 %v592, %v621
        %v629 = vmul.f32 %v593, %v621
        %v630 = vmul.f32 %v594, %v621
        %v631 = vmul.f32 %v595, %v621
        %v632 = vmul.f32 %v596, %v621
        %v633 = vmul.f32 %v597, %v621
        %v634 = vmul.f32 %v598, %v621
        %v635 = vmul.f32 %v599, %v621
        %v636 = vmul.f32 %v600, %v621
        %v637 = vmul.f32 %v601, %v621
        %v638 = vmul.f32 %v602, %v621
        %v639 = vmul.f32 %v603, %v621
        %v640 = vmul.f32 %v604, %v621
        %v641 = vmul.f32 %v605, %v621
        %v642 = vmul.f32 %v606, %v621
        %v643 = vmul.f32 %v607, %v621
        %v644 = vmul.f32 %v608, %v621
        %v645 = vmul.f32 %v609, %v621
        %v646 = vmul.f32 %v610, %v621
        %v647 = vmul.f32 %v611, %v621
        %v648 = vmul.f32 %v612, %v621
        %v649 = vmul.f32 %v613, %v621
        %v650 = vmul.f32 %v614, %v621
        %v651 = vmul.f32 %v615, %v621
        %v652 = vmul.f32 %v616, %v621
        %v653 = vmul.f32 %v617, %v621
        %v654 = vld [vmem:[#allocation2 + $0x1] sm:$0xff]
        %v655 = vld [vmem:[#allocation2 + $0x9] sm:$0xff]
        %v656 = vld [vmem:[#allocation2 + $0x19] sm:$0xff]
        %v657 = vld [vmem:[#allocation2 + $0x21] sm:$0xff]
        %v658 = vld [vmem:[#allocation2 + $0x31] sm:$0xff]
        %v659 = vld [vmem:[#allocation2 + $0x39] sm:$0xff]
        %v660 = vld [vmem:[#allocation2 + $0x49] sm:$0xff]
        %v661 = vld [vmem:[#allocation2 + $0x51] sm:$0xff]
        %v662 = vld [vmem:[#allocation2 + $0x61] sm:$0xff]
        %v663 = vld [vmem:[#allocation2 + $0x69] sm:$0xff]
        %v664 = vld [vmem:[#allocation2 + $0x79] sm:$0xff]
        %v665 = vld [vmem:[#allocation2 + $0x81] sm:$0xff]
        %v666 = vld [vmem:[#allocation2 + $0x91] sm:$0xff]
        %v667 = vld [vmem:[#allocation2 + $0x99] sm:$0xff]
        %v668 = vld [vmem:[#allocation2 + $0xa9] sm:$0xff]
        %v669 = vld [vmem:[#allocation2 + $0xb1] sm:$0xff]
        %v670 = vld [vmem:[#allocation2 + $0xc1] sm:$0xff]
        %v671 = vld [vmem:[#allocation2 + $0xc9] sm:$0xff]
        %v672 = vld [vmem:[#allocation2 + $0xd9] sm:$0xff]
        %v673 = vld [vmem:[#allocation2 + $0xe1] sm:$0xff]
        %v674 = vld [vmem:[#allocation2 + $0xf1] sm:$0xff]
        %v675 = vld [vmem:[#allocation2 + $0xf9] sm:$0xff]
        %v676 = vld [vmem:[#allocation2 + $0x109] sm:$0xff]
        %v677 = vld [vmem:[#allocation2 + $0x111] sm:$0xff]
        %v678 = vld [vmem:[#allocation2 + $0x121] sm:$0xff]
        %v679 = vld [vmem:[#allocation2 + $0x129] sm:$0xff]
        %v680 = vld [vmem:[#allocation2 + $0x139] sm:$0xff]
        %v681 = vld [vmem:[#allocation2 + $0x141] sm:$0xff]
        %v682 = vld [vmem:[#allocation2 + $0x151] sm:$0xff]
        %v683 = vld [vmem:[#allocation2 + $0x159] sm:$0xff]
        %v684 = vld [vmem:[#allocation2 + $0x169] sm:$0xff]
        %v685 = vld [vmem:[#allocation2 + $0x171] sm:$0xff]
        %v686 = vlaneseq
        %v687 = vshrl.u32 %v686, 7
        %v688 = vsub.s32 1, %v687
        %v689 = vrot.slane %v584, %v688
        %v690 = vmul.f32 %v654, %v689
        %v691 = vmul.f32 %v655, %v689
        %v692 = vmul.f32 %v656, %v689
        %v693 = vmul.f32 %v657, %v689
        %v694 = vmul.f32 %v658, %v689
        %v695 = vmul.f32 %v659, %v689
        %v696 = vmul.f32 %v660, %v689
        %v697 = vmul.f32 %v661, %v689
        %v698 = vmul.f32 %v662, %v689
        %v699 = vmul.f32 %v663, %v689
        %v700 = vmul.f32 %v664, %v689
        %v701 = vmul.f32 %v665, %v689
        %v702 = vmul.f32 %v666, %v689
        %v703 = vmul.f32 %v667, %v689
        %v704 = vmul.f32 %v668, %v689
        %v705 = vmul.f32 %v669, %v689
        %v706 = vmul.f32 %v670, %v689
        %v707 = vmul.f32 %v671, %v689
        %v708 = vmul.f32 %v672, %v689
        %v709 = vmul.f32 %v673, %v689
        %v710 = vmul.f32 %v674, %v689
        %v711 = vmul.f32 %v675, %v689
        %v712 = vmul.f32 %v676, %v689
        %v713 = vmul.f32 %v677, %v689
        %v714 = vmul.f32 %v678, %v689
        %v715 = vmul.f32 %v679, %v689
        %v716 = vmul.f32 %v680, %v689
        %v717 = vmul.f32 %v681, %v689
        %v718 = vmul.f32 %v682, %v689
        %v719 = vmul.f32 %v683, %v689
        %v720 = vmul.f32 %v684, %v689
        %v721 = vmul.f32 %v685, %v689
        %v722 = vadd.f32 %v622, %v690
        %v723 = vadd.f32 %v623, %v691
        %v724 = vadd.f32 %v624, %v692
        %v725 = vadd.f32 %v625, %v693
        %v726 = vadd.f32 %v626, %v694
        %v727 = vadd.f32 %v627, %v695
        %v728 = vadd.f32 %v628, %v696
        %v729 = vadd.f32 %v629, %v697
        %v730 = vadd.f32 %v630, %v698
        %v731 = vadd.f32 %v631, %v699
        %v732 = vadd.f32 %v632, %v700
        %v733 = vadd.f32 %v633, %v701
        %v734 = vadd.f32 %v634, %v702
        %v735 = vadd.f32 %v635, %v703
        %v736 = vadd.f32 %v636, %v704
        %v737 = vadd.f32 %v637, %v705
        %v738 = vadd.f32 %v638, %v706
        %v739 = vadd.f32 %v639, %v707
        %v740 = vadd.f32 %v640, %v708
        %v741 = vadd.f32 %v641, %v709
        %v742 = vadd.f32 %v642, %v710
        %v743 = vadd.f32 %v643, %v711
        %v744 = vadd.f32 %v644, %v712
        %v745 = vadd.f32 %v645, %v713
        %v746 = vadd.f32 %v646, %v714
        %v747 = vadd.f32 %v647, %v715
        %v748 = vadd.f32 %v648, %v716
        %v749 = vadd.f32 %v649, %v717
        %v750 = vadd.f32 %v650, %v718
        %v751 = vadd.f32 %v651, %v719
        %v752 = vadd.f32 %v652, %v720
        %v753 = vadd.f32 %v653, %v721
        %v754 = vld [vmem:[#allocation2 + $0x2] sm:$0xff]
        %v755 = vld [vmem:[#allocation2 + $0xa] sm:$0xff]
        %v756 = vld [vmem:[#allocation2 + $0x1a] sm:$0xff]
        %v757 = vld [vmem:[#allocation2 + $0x22] sm:$0xff]
        %v758 = vld [vmem:[#allocation2 + $0x32] sm:$0xff]
        %v759 = vld [vmem:[#allocation2 + $0x3a] sm:$0xff]
        %v760 = vld [vmem:[#allocation2 + $0x4a] sm:$0xff]
        %v761 = vld [vmem:[#allocation2 + $0x52] sm:$0xff]
        %v762 = vld [vmem:[#allocation2 + $0x62] sm:$0xff]
        %v763 = vld [vmem:[#allocation2 + $0x6a] sm:$0xff]
        %v764 = vld [vmem:[#allocation2 + $0x7a] sm:$0xff]
        %v765 = vld [vmem:[#allocation2 + $0x82] sm:$0xff]
        %v766 = vld [vmem:[#allocation2 + $0x92] sm:$0xff]
        %v767 = vld [vmem:[#allocation2 + $0x9a] sm:$0xff]
        %v768 = vld [vmem:[#allocation2 + $0xaa] sm:$0xff]
        %v769 = vld [vmem:[#allocation2 + $0xb2] sm:$0xff]
        %v770 = vld [vmem:[#allocation2 + $0xc2] sm:$0xff]
        %v771 = vld [vmem:[#allocation2 + $0xca] sm:$0xff]
        %v772 = vld [vmem:[#allocation2 + $0xda] sm:$0xff]
        %v773 = vld [vmem:[#allocation2 + $0xe2] sm:$0xff]
        %v774 = vld [vmem:[#allocation2 + $0xf2] sm:$0xff]
        %v775 = vld [vmem:[#allocation2 + $0xfa] sm:$0xff]
        %v776 = vld [vmem:[#allocation2 + $0x10a] sm:$0xff]
        %v777 = vld [vmem:[#allocation2 + $0x112] sm:$0xff]
        %v778 = vld [vmem:[#allocation2 + $0x122] sm:$0xff]
        %v779 = vld [vmem:[#allocation2 + $0x12a] sm:$0xff]
        %v780 = vld [vmem:[#allocation2 + $0x13a] sm:$0xff]
        %v781 = vld [vmem:[#allocation2 + $0x142] sm:$0xff]
        %v782 = vld [vmem:[#allocation2 + $0x152] sm:$0xff]
        %v783 = vld [vmem:[#allocation2 + $0x15a] sm:$0xff]
        %v784 = vld [vmem:[#allocation2 + $0x16a] sm:$0xff]
        %v785 = vld [vmem:[#allocation2 + $0x172] sm:$0xff]
        %v786 = vlaneseq
        %v787 = vshrl.u32 %v786, 7
        %v788 = vsub.s32 2, %v787
        %v789 = vrot.slane %v584, %v788
        %v790 = vmul.f32 %v754, %v789
        %v791 = vmul.f32 %v755, %v789
        %v792 = vmul.f32 %v756, %v789
        %v793 = vmul.f32 %v757, %v789
        %v794 = vmul.f32 %v758, %v789
        %v795 = vmul.f32 %v759, %v789
        %v796 = vmul.f32 %v760, %v789
        %v797 = vmul.f32 %v761, %v789
        %v798 = vmul.f32 %v762, %v789
        %v799 = vmul.f32 %v763, %v789
        %v800 = vmul.f32 %v764, %v789
        %v801 = vmul.f32 %v765, %v789
        %v802 = vmul.f32 %v766, %v789
        %v803 = vmul.f32 %v767, %v789
        %v804 = vmul.f32 %v768, %v789
        %v805 = vmul.f32 %v769, %v789
        %v806 = vmul.f32 %v770, %v789
        %v807 = vmul.f32 %v771, %v789
        %v808 = vmul.f32 %v772, %v789
        %v809 = vmul.f32 %v773, %v789
        %v810 = vmul.f32 %v774, %v789
        %v811 = vmul.f32 %v775, %v789
        %v812 = vmul.f32 %v776, %v789
        %v813 = vmul.f32 %v777, %v789
        %v814 = vmul.f32 %v778, %v789
        %v815 = vmul.f32 %v779, %v789
        %v816 = vmul.f32 %v780, %v789
        %v817 = vmul.f32 %v781, %v789
        %v818 = vmul.f32 %v782, %v789
        %v819 = vmul.f32 %v783, %v789
        %v820 = vmul.f32 %v784, %v789
        %v821 = vmul.f32 %v785, %v789
        %v822 = vadd.f32 %v722, %v790
        %v823 = vadd.f32 %v723, %v791
        %v824 = vadd.f32 %v724, %v792
        %v825 = vadd.f32 %v725, %v793
        %v826 = vadd.f32 %v726, %v794
        %v827 = vadd.f32 %v727, %v795
        %v828 = vadd.f32 %v728, %v796
        %v829 = vadd.f32 %v729, %v797
        %v830 = vadd.f32 %v730, %v798
        %v831 = vadd.f32 %v731, %v799
        %v832 = vadd.f32 %v732, %v800
        %v833 = vadd.f32 %v733, %v801
        %v834 = vadd.f32 %v734, %v802
        %v835 = vadd.f32 %v735, %v803
        %v836 = vadd.f32 %v736, %v804
        %v837 = vadd.f32 %v737, %v805
        %v838 = vadd.f32 %v738, %v806
        %v839 = vadd.f32 %v739, %v807
        %v840 = vadd.f32 %v740, %v808
        %v841 = vadd.f32 %v741, %v809
        %v842 = vadd.f32 %v742, %v810
        %v843 = vadd.f32 %v743, %v811
        %v844 = vadd.f32 %v744, %v812
        %v845 = vadd.f32 %v745, %v813
        %v846 = vadd.f32 %v746, %v814
        %v847 = vadd.f32 %v747, %v815
        %v848 = vadd.f32 %v748, %v816
        %v849 = vadd.f32 %v749, %v817
        %v850 = vadd.f32 %v750, %v818
        %v851 = vadd.f32 %v751, %v819
        %v852 = vadd.f32 %v752, %v820
        %v853 = vadd.f32 %v753, %v821
        %v854 = vld [vmem:[%s551] sm:$0xff]
        %v855 = vld [vmem:[%s551 + $0x8] sm:$0xff]
        %v856 = vld [vmem:[%s551 + $0x18] sm:$0xff]
        %v857 = vld [vmem:[%s551 + $0x20] sm:$0xff]
        %v858 = vld [vmem:[%s551 + $0x30] sm:$0xff]
        %v859 = vld [vmem:[%s551 + $0x38] sm:$0xff]
        %v860 = vld [vmem:[%s551 + $0x48] sm:$0xff]
        %v861 = vld [vmem:[%s551 + $0x50] sm:$0xff]
        %v862 = vld [vmem:[%s551 + $0x60] sm:$0xff]
        %v863 = vld [vmem:[%s551 + $0x68] sm:$0xff]
        %v864 = vld [vmem:[%s551 + $0x78] sm:$0xff]
        %v865 = vld [vmem:[%s551 + $0x80] sm:$0xff]
        %v866 = vld [vmem:[%s551 + $0x90] sm:$0xff]
        %v867 = vld [vmem:[%s551 + $0x98] sm:$0xff]
        %v868 = vld [vmem:[%s551 + $0xa8] sm:$0xff]
        %v869 = vld [vmem:[%s551 + $0xb0] sm:$0xff]
        %v870 = vld [vmem:[%s551 + $0xc0] sm:$0xff]
        %v871 = vld [vmem:[%s551 + $0xc8] sm:$0xff]
        %v872 = vld [vmem:[%s551 + $0xd8] sm:$0xff]
        %v873 = vld [vmem:[%s551 + $0xe0] sm:$0xff]
        %v874 = vld [vmem:[%s551 + $0xf0] sm:$0xff]
        %v875 = vld [vmem:[%s551 + $0xf8] sm:$0xff]
        %v876 = vld [vmem:[%s551 + $0x108] sm:$0xff]
        %v877 = vld [vmem:[%s551 + $0x110] sm:$0xff]
        %v878 = vld [vmem:[%s551 + $0x120] sm:$0xff]
        %v879 = vld [vmem:[%s551 + $0x128] sm:$0xff]
        %v880 = vld [vmem:[%s551 + $0x138] sm:$0xff]
        %v881 = vld [vmem:[%s551 + $0x140] sm:$0xff]
        %v882 = vld [vmem:[%s551 + $0x150] sm:$0xff]
        %v883 = vld [vmem:[%s551 + $0x158] sm:$0xff]
        %v884 = vld [vmem:[%s551 + $0x168] sm:$0xff]
        %v885 = vld [vmem:[%s551 + $0x170] sm:$0xff]
        %v886 = vlaneseq
        %v887 = vshrl.u32 %v886, 7
        %v888 = vsub.s32 3, %v887
        %v889 = vrot.slane %v584, %v888
        %v890 = vmul.f32 %v854, %v889
        %v891 = vmul.f32 %v855, %v889
        %v892 = vmul.f32 %v856, %v889
        %v893 = vmul.f32 %v857, %v889
        %v894 = vmul.f32 %v858, %v889
        %v895 = vmul.f32 %v859, %v889
        %v896 = vmul.f32 %v860, %v889
        %v897 = vmul.f32 %v861, %v889
        %v898 = vmul.f32 %v862, %v889
        %v899 = vmul.f32 %v863, %v889
        %v900 = vmul.f32 %v864, %v889
        %v901 = vmul.f32 %v865, %v889
        %v902 = vmul.f32 %v866, %v889
        %v903 = vmul.f32 %v867, %v889
        %v904 = vmul.f32 %v868, %v889
        %v905 = vmul.f32 %v869, %v889
        %v906 = vmul.f32 %v870, %v889
        %v907 = vmul.f32 %v871, %v889
        %v908 = vmul.f32 %v872, %v889
        %v909 = vmul.f32 %v873, %v889
        %v910 = vmul.f32 %v874, %v889
        %v911 = vmul.f32 %v875, %v889
        %v912 = vmul.f32 %v876, %v889
        %v913 = vmul.f32 %v877, %v889
        %v914 = vmul.f32 %v878, %v889
        %v915 = vmul.f32 %v879, %v889
        %v916 = vmul.f32 %v880, %v889
        %v917 = vmul.f32 %v881, %v889
        %v918 = vmul.f32 %v882, %v889
        %v919 = vmul.f32 %v883, %v889
        %v920 = vmul.f32 %v884, %v889
        %v921 = vmul.f32 %v885, %v889
        %v922 = vadd.f32 %v822, %v890
        %v923 = vadd.f32 %v823, %v891
        %v924 = vadd.f32 %v824, %v892
        %v925 = vadd.f32 %v825, %v893
        %v926 = vadd.f32 %v826, %v894
        %v927 = vadd.f32 %v827, %v895
        %v928 = vadd.f32 %v828, %v896
        %v929 = vadd.f32 %v829, %v897
        %v930 = vadd.f32 %v830, %v898
        %v931 = vadd.f32 %v831, %v899
        %v932 = vadd.f32 %v832, %v900
        %v933 = vadd.f32 %v833, %v901
        %v934 = vadd.f32 %v834, %v902
        %v935 = vadd.f32 %v835, %v903
        %v936 = vadd.f32 %v836, %v904
        %v937 = vadd.f32 %v837, %v905
        %v938 = vadd.f32 %v838, %v906
        %v939 = vadd.f32 %v839, %v907
        %v940 = vadd.f32 %v840, %v908
        %v941 = vadd.f32 %v841, %v909
        %v942 = vadd.f32 %v842, %v910
        %v943 = vadd.f32 %v843, %v911
        %v944 = vadd.f32 %v844, %v912
        %v945 = vadd.f32 %v845, %v913
        %v946 = vadd.f32 %v846, %v914
        %v947 = vadd.f32 %v847, %v915
        %v948 = vadd.f32 %v848, %v916
        %v949 = vadd.f32 %v849, %v917
        %v950 = vadd.f32 %v850, %v918
        %v951 = vadd.f32 %v851, %v919
        %v952 = vadd.f32 %v852, %v920
        %v953 = vadd.f32 %v853, %v921
        %v954 = vld [vmem:[%s551 + $0x1] sm:$0xff]
        %v955 = vld [vmem:[%s551 + $0x9] sm:$0xff]
        %v956 = vld [vmem:[%s551 + $0x19] sm:$0xff]
        %v957 = vld [vmem:[%s551 + $0x21] sm:$0xff]
        %v958 = vld [vmem:[%s551 + $0x31] sm:$0xff]
        %v959 = vld [vmem:[%s551 + $0x39] sm:$0xff]
        %v960 = vld [vmem:[%s551 + $0x49] sm:$0xff]
        %v961 = vld [vmem:[%s551 + $0x51] sm:$0xff]
        %v962 = vld [vmem:[%s551 + $0x61] sm:$0xff]
        %v963 = vld [vmem:[%s551 + $0x69] sm:$0xff]
        %v964 = vld [vmem:[%s551 + $0x79] sm:$0xff]
        %v965 = vld [vmem:[%s551 + $0x81] sm:$0xff]
        %v966 = vld [vmem:[%s551 + $0x91] sm:$0xff]
        %v967 = vld [vmem:[%s551 + $0x99] sm:$0xff]
        %v968 = vld [vmem:[%s551 + $0xa9] sm:$0xff]
        %v969 = vld [vmem:[%s551 + $0xb1] sm:$0xff]
        %v970 = vld [vmem:[%s551 + $0xc1] sm:$0xff]
        %v971 = vld [vmem:[%s551 + $0xc9] sm:$0xff]
        %v972 = vld [vmem:[%s551 + $0xd9] sm:$0xff]
        %v973 = vld [vmem:[%s551 + $0xe1] sm:$0xff]
        %v974 = vld [vmem:[%s551 + $0xf1] sm:$0xff]
        %v975 = vld [vmem:[%s551 + $0xf9] sm:$0xff]
        %v976 = vld [vmem:[%s551 + $0x109] sm:$0xff]
        %v977 = vld [vmem:[%s551 + $0x111] sm:$0xff]
        %v978 = vld [vmem:[%s551 + $0x121] sm:$0xff]
        %v979 = vld [vmem:[%s551 + $0x129] sm:$0xff]
        %v980 = vld [vmem:[%s551 + $0x139] sm:$0xff]
        %v981 = vld [vmem:[%s551 + $0x141] sm:$0xff]
        %v982 = vld [vmem:[%s551 + $0x151] sm:$0xff]
        %v983 = vld [vmem:[%s551 + $0x159] sm:$0xff]
        %v984 = vld [vmem:[%s551 + $0x169] sm:$0xff]
        %v985 = vld [vmem:[%s551 + $0x171] sm:$0xff]
        %v986 = vlaneseq
        %v987 = vshrl.u32 %v986, 7
        %v988 = vsub.s32 4, %v987
        %v989 = vrot.slane %v584, %v988
        %v990 = vmul.f32 %v954, %v989
        %v991 = vmul.f32 %v955, %v989
        %v992 = vmul.f32 %v956, %v989
        %v993 = vmul.f32 %v957, %v989
        %v994 = vmul.f32 %v958, %v989
        %v995 = vmul.f32 %v959, %v989
        %v996 = vmul.f32 %v960, %v989
        %v997 = vmul.f32 %v961, %v989
        %v998 = vmul.f32 %v962, %v989
        %v999 = vmul.f32 %v963, %v989
        %v1000 = vmul.f32 %v964, %v989
        %v1001 = vmul.f32 %v965, %v989
        %v1002 = vmul.f32 %v966, %v989
        %v1003 = vmul.f32 %v967, %v989
        %v1004 = vmul.f32 %v968, %v989
        %v1005 = vmul.f32 %v969, %v989
        %v1006 = vmul.f32 %v970, %v989
        %v1007 = vmul.f32 %v971, %v989
        %v1008 = vmul.f32 %v972, %v989
        %v1009 = vmul.f32 %v973, %v989
        %v1010 = vmul.f32 %v974, %v989
        %v1011 = vmul.f32 %v975, %v989
        %v1012 = vmul.f32 %v976, %v989
        %v1013 = vmul.f32 %v977, %v989
        %v1014 = vmul.f32 %v978, %v989
        %v1015 = vmul.f32 %v979, %v989
        %v1016 = vmul.f32 %v980, %v989
        %v1017 = vmul.f32 %v981, %v989
        %v1018 = vmul.f32 %v982, %v989
        %v1019 = vmul.f32 %v983, %v989
        %v1020 = vmul.f32 %v984, %v989
        %v1021 = vmul.f32 %v985, %v989
        %v1022 = vadd.f32 %v922, %v990
        %v1023 = vadd.f32 %v923, %v991
        %v1024 = vadd.f32 %v924, %v992
        %v1025 = vadd.f32 %v925, %v993
        %v1026 = vadd.f32 %v926, %v994
        %v1027 = vadd.f32 %v927, %v995
        %v1028 = vadd.f32 %v928, %v996
        %v1029 = vadd.f32 %v929, %v997
        %v1030 = vadd.f32 %v930, %v998
        %v1031 = vadd.f32 %v931, %v999
        %v1032 = vadd.f32 %v932, %v1000
        %v1033 = vadd.f32 %v933, %v1001
        %v1034 = vadd.f32 %v934, %v1002
        %v1035 = vadd.f32 %v935, %v1003
        %v1036 = vadd.f32 %v936, %v1004
        %v1037 = vadd.f32 %v937, %v1005
        %v1038 = vadd.f32 %v938, %v1006
        %v1039 = vadd.f32 %v939, %v1007
        %v1040 = vadd.f32 %v940, %v1008
        %v1041 = vadd.f32 %v941, %v1009
        %v1042 = vadd.f32 %v942, %v1010
        %v1043 = vadd.f32 %v943, %v1011
        %v1044 = vadd.f32 %v944, %v1012
        %v1045 = vadd.f32 %v945, %v1013
        %v1046 = vadd.f32 %v946, %v1014
        %v1047 = vadd.f32 %v947, %v1015
        %v1048 = vadd.f32 %v948, %v1016
        %v1049 = vadd.f32 %v949, %v1017
        %v1050 = vadd.f32 %v950, %v1018
        %v1051 = vadd.f32 %v951, %v1019
        %v1052 = vadd.f32 %v952, %v1020
        %v1053 = vadd.f32 %v953, %v1021
        %v1054 = vld [vmem:[%s551 + $0x2] sm:$0xff]
        %v1055 = vld [vmem:[%s551 + $0xa] sm:$0xff]
        %v1056 = vld [vmem:[%s551 + $0x1a] sm:$0xff]
        %v1057 = vld [vmem:[%s551 + $0x22] sm:$0xff]
        %v1058 = vld [vmem:[%s551 + $0x32] sm:$0xff]
        %v1059 = vld [vmem:[%s551 + $0x3a] sm:$0xff]
        %v1060 = vld [vmem:[%s551 + $0x4a] sm:$0xff]
        %v1061 = vld [vmem:[%s551 + $0x52] sm:$0xff]
        %v1062 = vld [vmem:[%s551 + $0x62] sm:$0xff]
        %v1063 = vld [vmem:[%s551 + $0x6a] sm:$0xff]
        %v1064 = vld [vmem:[%s551 + $0x7a] sm:$0xff]
        %v1065 = vld [vmem:[%s551 + $0x82] sm:$0xff]
        %v1066 = vld [vmem:[%s551 + $0x92] sm:$0xff]
        %v1067 = vld [vmem:[%s551 + $0x9a] sm:$0xff]
        %v1068 = vld [vmem:[%s551 + $0xaa] sm:$0xff]
        %v1069 = vld [vmem:[%s551 + $0xb2] sm:$0xff]
        %v1070 = vld [vmem:[%s551 + $0xc2] sm:$0xff]
        %v1071 = vld [vmem:[%s551 + $0xca] sm:$0xff]
        %v1072 = vld [vmem:[%s551 + $0xda] sm:$0xff]
        %v1073 = vld [vmem:[%s551 + $0xe2] sm:$0xff]
        %v1074 = vld [vmem:[%s551 + $0xf2] sm:$0xff]
        %v1075 = vld [vmem:[%s551 + $0xfa] sm:$0xff]
        %v1076 = vld [vmem:[%s551 + $0x10a] sm:$0xff]
        %v1077 = vld [vmem:[%s551 + $0x112] sm:$0xff]
        %v1078 = vld [vmem:[%s551 + $0x122] sm:$0xff]
        %v1079 = vld [vmem:[%s551 + $0x12a] sm:$0xff]
        %v1080 = vld [vmem:[%s551 + $0x13a] sm:$0xff]
        %v1081 = vld [vmem:[%s551 + $0x142] sm:$0xff]
        %v1082 = vld [vmem:[%s551 + $0x152] sm:$0xff]
        %v1083 = vld [vmem:[%s551 + $0x15a] sm:$0xff]
        %v1084 = vld [vmem:[%s551 + $0x16a] sm:$0xff]
        %v1085 = vld [vmem:[%s551 + $0x172] sm:$0xff]
        %v1086 = vlaneseq
        %v1087 = vshrl.u32 %v1086, 7
        %v1088 = vsub.s32 5, %v1087
        %v1089 = vrot.slane %v584, %v1088
        %v1090 = vmul.f32 %v1054, %v1089
        %v1091 = vmul.f32 %v1055, %v1089
        %v1092 = vmul.f32 %v1056, %v1089
        %v1093 = vmul.f32 %v1057, %v1089
        %v1094 = vmul.f32 %v1058, %v1089
        %v1095 = vmul.f32 %v1059, %v1089
        %v1096 = vmul.f32 %v1060, %v1089
        %v1097 = vmul.f32 %v1061, %v1089
        %v1098 = vmul.f32 %v1062, %v1089
        %v1099 = vmul.f32 %v1063, %v1089
        %v1100 = vmul.f32 %v1064, %v1089
        %v1101 = vmul.f32 %v1065, %v1089
        %v1102 = vmul.f32 %v1066, %v1089
        %v1103 = vmul.f32 %v1067, %v1089
        %v1104 = vmul.f32 %v1068, %v1089
        %v1105 = vmul.f32 %v1069, %v1089
        %v1106 = vmul.f32 %v1070, %v1089
        %v1107 = vmul.f32 %v1071, %v1089
        %v1108 = vmul.f32 %v1072, %v1089
        %v1109 = vmul.f32 %v1073, %v1089
        %v1110 = vmul.f32 %v1074, %v1089
        %v1111 = vmul.f32 %v1075, %v1089
        %v1112 = vmul.f32 %v1076, %v1089
        %v1113 = vmul.f32 %v1077, %v1089
        %v1114 = vmul.f32 %v1078, %v1089
        %v1115 = vmul.f32 %v1079, %v1089
        %v1116 = vmul.f32 %v1080, %v1089
        %v1117 = vmul.f32 %v1081, %v1089
        %v1118 = vmul.f32 %v1082, %v1089
        %v1119 = vmul.f32 %v1083, %v1089
        %v1120 = vmul.f32 %v1084, %v1089
        %v1121 = vmul.f32 %v1085, %v1089
        %v1122 = vadd.f32 %v1022, %v1090
        %v1123 = vadd.f32 %v1023, %v1091
        %v1124 = vadd.f32 %v1024, %v1092
        %v1125 = vadd.f32 %v1025, %v1093
        %v1126 = vadd.f32 %v1026, %v1094
        %v1127 = vadd.f32 %v1027, %v1095
        %v1128 = vadd.f32 %v1028, %v1096
        %v1129 = vadd.f32 %v1029, %v1097
        %v1130 = vadd.f32 %v1030, %v1098
        %v1131 = vadd.f32 %v1031, %v1099
        %v1132 = vadd.f32 %v1032, %v1100
        %v1133 = vadd.f32 %v1033, %v1101
        %v1134 = vadd.f32 %v1034, %v1102
        %v1135 = vadd.f32 %v1035, %v1103
        %v1136 = vadd.f32 %v1036, %v1104
        %v1137 = vadd.f32 %v1037, %v1105
        %v1138 = vadd.f32 %v1038, %v1106
        %v1139 = vadd.f32 %v1039, %v1107
        %v1140 = vadd.f32 %v1040, %v1108
        %v1141 = vadd.f32 %v1041, %v1109
        %v1142 = vadd.f32 %v1042, %v1110
        %v1143 = vadd.f32 %v1043, %v1111
        %v1144 = vadd.f32 %v1044, %v1112
        %v1145 = vadd.f32 %v1045, %v1113
        %v1146 = vadd.f32 %v1046, %v1114
        %v1147 = vadd.f32 %v1047, %v1115
        %v1148 = vadd.f32 %v1048, %v1116
        %v1149 = vadd.f32 %v1049, %v1117
        %v1150 = vadd.f32 %v1050, %v1118
        %v1151 = vadd.f32 %v1051, %v1119
        %v1152 = vadd.f32 %v1052, %v1120
        %v1153 = vadd.f32 %v1053, %v1121
        %s1154 = scalar_lea.vmem [#allocation2], 48
        %v1155 = vld [vmem:[%s1154] sm:$0xff]
        %v1156 = vld [vmem:[%s1154 + $0x8] sm:$0xff]
        %v1157 = vld [vmem:[%s1154 + $0x18] sm:$0xff]
        %v1158 = vld [vmem:[%s1154 + $0x20] sm:$0xff]
        %v1159 = vld [vmem:[%s1154 + $0x30] sm:$0xff]
        %v1160 = vld [vmem:[%s1154 + $0x38] sm:$0xff]
        %v1161 = vld [vmem:[%s1154 + $0x48] sm:$0xff]
        %v1162 = vld [vmem:[%s1154 + $0x50] sm:$0xff]
        %v1163 = vld [vmem:[%s1154 + $0x60] sm:$0xff]
        %v1164 = vld [vmem:[%s1154 + $0x68] sm:$0xff]
        %v1165 = vld [vmem:[%s1154 + $0x78] sm:$0xff]
        %v1166 = vld [vmem:[%s1154 + $0x80] sm:$0xff]
        %v1167 = vld [vmem:[%s1154 + $0x90] sm:$0xff]
        %v1168 = vld [vmem:[%s1154 + $0x98] sm:$0xff]
        %v1169 = vld [vmem:[%s1154 + $0xa8] sm:$0xff]
        %v1170 = vld [vmem:[%s1154 + $0xb0] sm:$0xff]
        %v1171 = vld [vmem:[%s1154 + $0xc0] sm:$0xff]
        %v1172 = vld [vmem:[%s1154 + $0xc8] sm:$0xff]
        %v1173 = vld [vmem:[%s1154 + $0xd8] sm:$0xff]
        %v1174 = vld [vmem:[%s1154 + $0xe0] sm:$0xff]
        %v1175 = vld [vmem:[%s1154 + $0xf0] sm:$0xff]
        %v1176 = vld [vmem:[%s1154 + $0xf8] sm:$0xff]
        %v1177 = vld [vmem:[%s1154 + $0x108] sm:$0xff]
        %v1178 = vld [vmem:[%s1154 + $0x110] sm:$0xff]
        %v1179 = vld [vmem:[%s1154 + $0x120] sm:$0xff]
        %v1180 = vld [vmem:[%s1154 + $0x128] sm:$0xff]
        %v1181 = vld [vmem:[%s1154 + $0x138] sm:$0xff]
        %v1182 = vld [vmem:[%s1154 + $0x140] sm:$0xff]
        %v1183 = vld [vmem:[%s1154 + $0x150] sm:$0xff]
        %v1184 = vld [vmem:[%s1154 + $0x158] sm:$0xff]
        %v1185 = vld [vmem:[%s1154 + $0x168] sm:$0xff]
        %v1186 = vld [vmem:[%s1154 + $0x170] sm:$0xff]
        %v1187 = vlaneseq
        %v1188 = vshrl.u32 %v1187, 7
        %v1189 = vsub.s32 6, %v1188
        %v1190 = vrot.slane %v584, %v1189
        %v1191 = vmul.f32 %v1155, %v1190
        %v1192 = vmul.f32 %v1156, %v1190
        %v1193 = vmul.f32 %v1157, %v1190
        %v1194 = vmul.f32 %v1158, %v1190
        %v1195 = vmul.f32 %v1159, %v1190
        %v1196 = vmul.f32 %v1160, %v1190
        %v1197 = vmul.f32 %v1161, %v1190
        %v1198 = vmul.f32 %v1162, %v1190
        %v1199 = vmul.f32 %v1163, %v1190
        %v1200 = vmul.f32 %v1164, %v1190
        %v1201 = vmul.f32 %v1165, %v1190
        %v1202 = vmul.f32 %v1166, %v1190
        %v1203 = vmul.f32 %v1167, %v1190
        %v1204 = vmul.f32 %v1168, %v1190
        %v1205 = vmul.f32 %v1169, %v1190
        %v1206 = vmul.f32 %v1170, %v1190
        %v1207 = vmul.f32 %v1171, %v1190
        %v1208 = vmul.f32 %v1172, %v1190
        %v1209 = vmul.f32 %v1173, %v1190
        %v1210 = vmul.f32 %v1174, %v1190
        %v1211 = vmul.f32 %v1175, %v1190
        %v1212 = vmul.f32 %v1176, %v1190
        %v1213 = vmul.f32 %v1177, %v1190
        %v1214 = vmul.f32 %v1178, %v1190
        %v1215 = vmul.f32 %v1179, %v1190
        %v1216 = vmul.f32 %v1180, %v1190
        %v1217 = vmul.f32 %v1181, %v1190
        %v1218 = vmul.f32 %v1182, %v1190
        %v1219 = vmul.f32 %v1183, %v1190
        %v1220 = vmul.f32 %v1184, %v1190
        %v1221 = vmul.f32 %v1185, %v1190
        %v1222 = vmul.f32 %v1186, %v1190
        %v1223 = vadd.f32 %v1122, %v1191
        %v1224 = vadd.f32 %v1123, %v1192
        %v1225 = vadd.f32 %v1124, %v1193
        %v1226 = vadd.f32 %v1125, %v1194
        %v1227 = vadd.f32 %v1126, %v1195
        %v1228 = vadd.f32 %v1127, %v1196
        %v1229 = vadd.f32 %v1128, %v1197
        %v1230 = vadd.f32 %v1129, %v1198
        %v1231 = vadd.f32 %v1130, %v1199
        %v1232 = vadd.f32 %v1131, %v1200
        %v1233 = vadd.f32 %v1132, %v1201
        %v1234 = vadd.f32 %v1133, %v1202
        %v1235 = vadd.f32 %v1134, %v1203
        %v1236 = vadd.f32 %v1135, %v1204
        %v1237 = vadd.f32 %v1136, %v1205
        %v1238 = vadd.f32 %v1137, %v1206
        %v1239 = vadd.f32 %v1138, %v1207
        %v1240 = vadd.f32 %v1139, %v1208
        %v1241 = vadd.f32 %v1140, %v1209
        %v1242 = vadd.f32 %v1141, %v1210
        %v1243 = vadd.f32 %v1142, %v1211
        %v1244 = vadd.f32 %v1143, %v1212
        %v1245 = vadd.f32 %v1144, %v1213
        %v1246 = vadd.f32 %v1145, %v1214
        %v1247 = vadd.f32 %v1146, %v1215
        %v1248 = vadd.f32 %v1147, %v1216
        %v1249 = vadd.f32 %v1148, %v1217
        %v1250 = vadd.f32 %v1149, %v1218
        %v1251 = vadd.f32 %v1150, %v1219
        %v1252 = vadd.f32 %v1151, %v1220
        %v1253 = vadd.f32 %v1152, %v1221
        %v1254 = vadd.f32 %v1153, %v1222
        %v1255 = vld [vmem:[%s1154 + $0x1] sm:$0xff]
        %v1256 = vld [vmem:[%s1154 + $0x9] sm:$0xff]
        %v1257 = vld [vmem:[%s1154 + $0x19] sm:$0xff]
        %v1258 = vld [vmem:[%s1154 + $0x21] sm:$0xff]
        %v1259 = vld [vmem:[%s1154 + $0x31] sm:$0xff]
        %v1260 = vld [vmem:[%s1154 + $0x39] sm:$0xff]
        %v1261 = vld [vmem:[%s1154 + $0x49] sm:$0xff]
        %v1262 = vld [vmem:[%s1154 + $0x51] sm:$0xff]
        %v1263 = vld [vmem:[%s1154 + $0x61] sm:$0xff]
        %v1264 = vld [vmem:[%s1154 + $0x69] sm:$0xff]
        %v1265 = vld [vmem:[%s1154 + $0x79] sm:$0xff]
        %v1266 = vld [vmem:[%s1154 + $0x81] sm:$0xff]
        %v1267 = vld [vmem:[%s1154 + $0x91] sm:$0xff]
        %v1268 = vld [vmem:[%s1154 + $0x99] sm:$0xff]
        %v1269 = vld [vmem:[%s1154 + $0xa9] sm:$0xff]
        %v1270 = vld [vmem:[%s1154 + $0xb1] sm:$0xff]
        %v1271 = vld [vmem:[%s1154 + $0xc1] sm:$0xff]
        %v1272 = vld [vmem:[%s1154 + $0xc9] sm:$0xff]
        %v1273 = vld [vmem:[%s1154 + $0xd9] sm:$0xff]
        %v1274 = vld [vmem:[%s1154 + $0xe1] sm:$0xff]
        %v1275 = vld [vmem:[%s1154 + $0xf1] sm:$0xff]
        %v1276 = vld [vmem:[%s1154 + $0xf9] sm:$0xff]
        %v1277 = vld [vmem:[%s1154 + $0x109] sm:$0xff]
        %v1278 = vld [vmem:[%s1154 + $0x111] sm:$0xff]
        %v1279 = vld [vmem:[%s1154 + $0x121] sm:$0xff]
        %v1280 = vld [vmem:[%s1154 + $0x129] sm:$0xff]
        %v1281 = vld [vmem:[%s1154 + $0x139] sm:$0xff]
        %v1282 = vld [vmem:[%s1154 + $0x141] sm:$0xff]
        %v1283 = vld [vmem:[%s1154 + $0x151] sm:$0xff]
        %v1284 = vld [vmem:[%s1154 + $0x159] sm:$0xff]
        %v1285 = vld [vmem:[%s1154 + $0x169] sm:$0xff]
        %v1286 = vld [vmem:[%s1154 + $0x171] sm:$0xff]
        %v1287 = vlaneseq
        %v1288 = vshrl.u32 %v1287, 7
        %v1289 = vsub.s32 7, %v1288
        %v1290 = vrot.slane %v584, %v1289
        %v1291 = vmul.f32 %v1255, %v1290
        %v1292 = vmul.f32 %v1256, %v1290
        %v1293 = vmul.f32 %v1257, %v1290
        %v1294 = vmul.f32 %v1258, %v1290
        %v1295 = vmul.f32 %v1259, %v1290
        %v1296 = vmul.f32 %v1260, %v1290
        %v1297 = vmul.f32 %v1261, %v1290
        %v1298 = vmul.f32 %v1262, %v1290
        %v1299 = vmul.f32 %v1263, %v1290
        %v1300 = vmul.f32 %v1264, %v1290
        %v1301 = vmul.f32 %v1265, %v1290
        %v1302 = vmul.f32 %v1266, %v1290
        %v1303 = vmul.f32 %v1267, %v1290
        %v1304 = vmul.f32 %v1268, %v1290
        %v1305 = vmul.f32 %v1269, %v1290
        %v1306 = vmul.f32 %v1270, %v1290
        %v1307 = vmul.f32 %v1271, %v1290
        %v1308 = vmul.f32 %v1272, %v1290
        %v1309 = vmul.f32 %v1273, %v1290
        %v1310 = vmul.f32 %v1274, %v1290
        %v1311 = vmul.f32 %v1275, %v1290
        %v1312 = vmul.f32 %v1276, %v1290
        %v1313 = vmul.f32 %v1277, %v1290
        %v1314 = vmul.f32 %v1278, %v1290
        %v1315 = vmul.f32 %v1279, %v1290
        %v1316 = vmul.f32 %v1280, %v1290
        %v1317 = vmul.f32 %v1281, %v1290
        %v1318 = vmul.f32 %v1282, %v1290
        %v1319 = vmul.f32 %v1283, %v1290
        %v1320 = vmul.f32 %v1284, %v1290
        %v1321 = vmul.f32 %v1285, %v1290
        %v1322 = vmul.f32 %v1286, %v1290
        %v1323 = vadd.f32 %v1223, %v1291
        %v1324 = vadd.f32 %v1224, %v1292
        %v1325 = vadd.f32 %v1225, %v1293
        %v1326 = vadd.f32 %v1226, %v1294
        %v1327 = vadd.f32 %v1227, %v1295
        %v1328 = vadd.f32 %v1228, %v1296
        %v1329 = vadd.f32 %v1229, %v1297
        %v1330 = vadd.f32 %v1230, %v1298
        %v1331 = vadd.f32 %v1231, %v1299
        %v1332 = vadd.f32 %v1232, %v1300
        %v1333 = vadd.f32 %v1233, %v1301
        %v1334 = vadd.f32 %v1234, %v1302
        %v1335 = vadd.f32 %v1235, %v1303
        %v1336 = vadd.f32 %v1236, %v1304
        %v1337 = vadd.f32 %v1237, %v1305
        %v1338 = vadd.f32 %v1238, %v1306
        %v1339 = vadd.f32 %v1239, %v1307
        %v1340 = vadd.f32 %v1240, %v1308
        %v1341 = vadd.f32 %v1241, %v1309
        %v1342 = vadd.f32 %v1242, %v1310
        %v1343 = vadd.f32 %v1243, %v1311
        %v1344 = vadd.f32 %v1244, %v1312
        %v1345 = vadd.f32 %v1245, %v1313
        %v1346 = vadd.f32 %v1246, %v1314
        %v1347 = vadd.f32 %v1247, %v1315
        %v1348 = vadd.f32 %v1248, %v1316
        %v1349 = vadd.f32 %v1249, %v1317
        %v1350 = vadd.f32 %v1250, %v1318
        %v1351 = vadd.f32 %v1251, %v1319
        %v1352 = vadd.f32 %v1252, %v1320
        %v1353 = vadd.f32 %v1253, %v1321
        %v1354 = vadd.f32 %v1254, %v1322
        %v1355 = vld [vmem:[%s1154 + $0x2] sm:$0xff]
        %v1356 = vld [vmem:[%s1154 + $0xa] sm:$0xff]
        %v1357 = vld [vmem:[%s1154 + $0x1a] sm:$0xff]
        %v1358 = vld [vmem:[%s1154 + $0x22] sm:$0xff]
        %v1359 = vld [vmem:[%s1154 + $0x32] sm:$0xff]
        %v1360 = vld [vmem:[%s1154 + $0x3a] sm:$0xff]
        %v1361 = vld [vmem:[%s1154 + $0x4a] sm:$0xff]
        %v1362 = vld [vmem:[%s1154 + $0x52] sm:$0xff]
        %v1363 = vld [vmem:[%s1154 + $0x62] sm:$0xff]
        %v1364 = vld [vmem:[%s1154 + $0x6a] sm:$0xff]
        %v1365 = vld [vmem:[%s1154 + $0x7a] sm:$0xff]
        %v1366 = vld [vmem:[%s1154 + $0x82] sm:$0xff]
        %v1367 = vld [vmem:[%s1154 + $0x92] sm:$0xff]
        %v1368 = vld [vmem:[%s1154 + $0x9a] sm:$0xff]
        %v1369 = vld [vmem:[%s1154 + $0xaa] sm:$0xff]
        %v1370 = vld [vmem:[%s1154 + $0xb2] sm:$0xff]
        %v1371 = vld [vmem:[%s1154 + $0xc2] sm:$0xff]
        %v1372 = vld [vmem:[%s1154 + $0xca] sm:$0xff]
        %v1373 = vld [vmem:[%s1154 + $0xda] sm:$0xff]
        %v1374 = vld [vmem:[%s1154 + $0xe2] sm:$0xff]
        %v1375 = vld [vmem:[%s1154 + $0xf2] sm:$0xff]
        %v1376 = vld [vmem:[%s1154 + $0xfa] sm:$0xff]
        %v1377 = vld [vmem:[%s1154 + $0x10a] sm:$0xff]
        %v1378 = vld [vmem:[%s1154 + $0x112] sm:$0xff]
        %v1379 = vld [vmem:[%s1154 + $0x122] sm:$0xff]
        %v1380 = vld [vmem:[%s1154 + $0x12a] sm:$0xff]
        %v1381 = vld [vmem:[%s1154 + $0x13a] sm:$0xff]
        %v1382 = vld [vmem:[%s1154 + $0x142] sm:$0xff]
        %v1383 = vld [vmem:[%s1154 + $0x152] sm:$0xff]
        %v1384 = vld [vmem:[%s1154 + $0x15a] sm:$0xff]
        %v1385 = vld [vmem:[%s1154 + $0x16a] sm:$0xff]
        %v1386 = vld [vmem:[%s1154 + $0x172] sm:$0xff]
        %v1387 = vlaneseq
        %v1388 = vshrl.u32 %v1387, 7
        %v1389 = vsub.s32 0, %v1388
        %v1390 = vrot.slane %v585, %v1389
        %v1391 = vmul.f32 %v1355, %v1390
        %v1392 = vmul.f32 %v1356, %v1390
        %v1393 = vmul.f32 %v1357, %v1390
        %v1394 = vmul.f32 %v1358, %v1390
        %v1395 = vmul.f32 %v1359, %v1390
        %v1396 = vmul.f32 %v1360, %v1390
        %v1397 = vmul.f32 %v1361, %v1390
        %v1398 = vmul.f32 %v1362, %v1390
        %v1399 = vmul.f32 %v1363, %v1390
        %v1400 = vmul.f32 %v1364, %v1390
        %v1401 = vmul.f32 %v1365, %v1390
        %v1402 = vmul.f32 %v1366, %v1390
        %v1403 = vmul.f32 %v1367, %v1390
        %v1404 = vmul.f32 %v1368, %v1390
        %v1405 = vmul.f32 %v1369, %v1390
        %v1406 = vmul.f32 %v1370, %v1390
        %v1407 = vmul.f32 %v1371, %v1390
        %v1408 = vmul.f32 %v1372, %v1390
        %v1409 = vmul.f32 %v1373, %v1390
        %v1410 = vmul.f32 %v1374, %v1390
        %v1411 = vmul.f32 %v1375, %v1390
        %v1412 = vmul.f32 %v1376, %v1390
        %v1413 = vmul.f32 %v1377, %v1390
        %v1414 = vmul.f32 %v1378, %v1390
        %v1415 = vmul.f32 %v1379, %v1390
        %v1416 = vmul.f32 %v1380, %v1390
        %v1417 = vmul.f32 %v1381, %v1390
        %v1418 = vmul.f32 %v1382, %v1390
        %v1419 = vmul.f32 %v1383, %v1390
        %v1420 = vmul.f32 %v1384, %v1390
        %v1421 = vmul.f32 %v1385, %v1390
        %v1422 = vmul.f32 %v1386, %v1390
        %v1423 = vadd.f32 %v1323, %v1391
        %v1424 = vadd.f32 %v1324, %v1392
        %v1425 = vadd.f32 %v1325, %v1393
        %v1426 = vadd.f32 %v1326, %v1394
        %v1427 = vadd.f32 %v1327, %v1395
        %v1428 = vadd.f32 %v1328, %v1396
        %v1429 = vadd.f32 %v1329, %v1397
        %v1430 = vadd.f32 %v1330, %v1398
        %v1431 = vadd.f32 %v1331, %v1399
        %v1432 = vadd.f32 %v1332, %v1400
        %v1433 = vadd.f32 %v1333, %v1401
        %v1434 = vadd.f32 %v1334, %v1402
        %v1435 = vadd.f32 %v1335, %v1403
        %v1436 = vadd.f32 %v1336, %v1404
        %v1437 = vadd.f32 %v1337, %v1405
        %v1438 = vadd.f32 %v1338, %v1406
        %v1439 = vadd.f32 %v1339, %v1407
        %v1440 = vadd.f32 %v1340, %v1408
        %v1441 = vadd.f32 %v1341, %v1409
        %v1442 = vadd.f32 %v1342, %v1410
        %v1443 = vadd.f32 %v1343, %v1411
        %v1444 = vadd.f32 %v1344, %v1412
        %v1445 = vadd.f32 %v1345, %v1413
        %v1446 = vadd.f32 %v1346, %v1414
        %v1447 = vadd.f32 %v1347, %v1415
        %v1448 = vadd.f32 %v1348, %v1416
        %v1449 = vadd.f32 %v1349, %v1417
        %v1450 = vadd.f32 %v1350, %v1418
        %v1451 = vadd.f32 %v1351, %v1419
        %v1452 = vadd.f32 %v1352, %v1420
        %v1453 = vadd.f32 %v1353, %v1421
        %v1454 = vadd.f32 %v1354, %v1422
        %v1455 = vld [vmem:[%s4] sm:$0x1]
        %v1457 = vlaneseq
        %v1458 = vshrl.u32 %v1457, 7
        %v1459 = vsub.s32 0, %v1458
        %v1460 = vrot.slane %v1455, %v1459
        %v1462 = vadd.f32 %v1423, %v1460
        %v1463 = vadd.f32 %v1424, %v1460
        %v1464 = vadd.f32 %v1425, %v1460
        %v1465 = vadd.f32 %v1426, %v1460
        %v1466 = vadd.f32 %v1427, %v1460
        %v1467 = vadd.f32 %v1428, %v1460
        %v1468 = vadd.f32 %v1429, %v1460
        %v1469 = vadd.f32 %v1430, %v1460
        %v1470 = vadd.f32 %v1431, %v1460
        %v1471 = vadd.f32 %v1432, %v1460
        %v1472 = vadd.f32 %v1433, %v1460
        %v1473 = vadd.f32 %v1434, %v1460
        %v1474 = vadd.f32 %v1435, %v1460
        %v1475 = vadd.f32 %v1436, %v1460
        %v1476 = vadd.f32 %v1437, %v1460
        %v1477 = vadd.f32 %v1438, %v1460
        %v1478 = vadd.f32 %v1439, %v1460
        %v1479 = vadd.f32 %v1440, %v1460
        %v1480 = vadd.f32 %v1441, %v1460
        %v1481 = vadd.f32 %v1442, %v1460
        %v1482 = vadd.f32 %v1443, %v1460
        %v1483 = vadd.f32 %v1444, %v1460
        %v1484 = vadd.f32 %v1445, %v1460
        %v1485 = vadd.f32 %v1446, %v1460
        %v1486 = vadd.f32 %v1447, %v1460
        %v1487 = vadd.f32 %v1448, %v1460
        %v1488 = vadd.f32 %v1449, %v1460
        %v1489 = vadd.f32 %v1450, %v1460
        %v1490 = vadd.f32 %v1451, %v1460
        %v1491 = vadd.f32 %v1452, %v1460
        %v1492 = vadd.f32 %v1453, %v1460
        %v1493 = vadd.f32 %v1454, %v1460
        %v1494 = vpack.c.bf16 %v1463, %v1462
        %v1495 = vpack.c.bf16 %v1465, %v1464
        %v1496 = vpack.c.bf16 %v1467, %v1466
        %v1497 = vpack.c.bf16 %v1469, %v1468
        %v1498 = vpack.c.bf16 %v1471, %v1470
        %v1499 = vpack.c.bf16 %v1473, %v1472
        %v1500 = vpack.c.bf16 %v1475, %v1474
        %v1501 = vpack.c.bf16 %v1477, %v1476
        %v1502 = vpack.c.bf16 %v1479, %v1478
        %v1503 = vpack.c.bf16 %v1481, %v1480
        %v1504 = vpack.c.bf16 %v1483, %v1482
        %v1505 = vpack.c.bf16 %v1485, %v1484
        %v1506 = vpack.c.bf16 %v1487, %v1486
        %v1507 = vpack.c.bf16 %v1489, %v1488
        %v1508 = vpack.c.bf16 %v1491, %v1490
        %v1509 = vpack.c.bf16 %v1493, %v1492
        %v1526 = vunpack.c.l.b16 %v1494
        %v1527 = vunpack.c.h.b16 %v1494
        %v1528 = vunpack.c.l.b16 %v1495
        %v1529 = vunpack.c.h.b16 %v1495
        %v1530 = vunpack.c.l.b16 %v1496
        %v1531 = vunpack.c.h.b16 %v1496
        %v1532 = vunpack.c.l.b16 %v1497
        %v1533 = vunpack.c.h.b16 %v1497
        %v1534 = vunpack.c.l.b16 %v1498
        %v1535 = vunpack.c.h.b16 %v1498
        %v1536 = vunpack.c.l.b16 %v1499
        %v1537 = vunpack.c.h.b16 %v1499
        %v1538 = vunpack.c.l.b16 %v1500
        %v1539 = vunpack.c.h.b16 %v1500
        %v1540 = vunpack.c.l.b16 %v1501
        %v1541 = vunpack.c.h.b16 %v1501
        %v1542 = vunpack.c.l.b16 %v1502
        %v1543 = vunpack.c.h.b16 %v1502
        %v1544 = vunpack.c.l.b16 %v1503
        %v1545 = vunpack.c.h.b16 %v1503
        %v1546 = vunpack.c.l.b16 %v1504
        %v1547 = vunpack.c.h.b16 %v1504
        %v1548 = vunpack.c.l.b16 %v1505
        %v1549 = vunpack.c.h.b16 %v1505
        %v1550 = vunpack.c.l.b16 %v1506
        %v1551 = vunpack.c.h.b16 %v1506
        %v1552 = vunpack.c.l.b16 %v1507
        %v1553 = vunpack.c.h.b16 %v1507
        %v1554 = vunpack.c.l.b16 %v1508
        %v1555 = vunpack.c.h.b16 %v1508
        %v1556 = vunpack.c.l.b16 %v1509
        %v1557 = vunpack.c.h.b16 %v1509
        %v1558 = vpack.c.b16 %v1526, %v1526
        %v1559 = vpack.c.b16 %v1527, %v1527
        %v1560 = vpack.c.b16 %v1528, %v1528
        %v1561 = vpack.c.b16 %v1529, %v1529
        %v1562 = vpack.c.b16 %v1530, %v1530
        %v1563 = vpack.c.b16 %v1531, %v1531
        %v1564 = vpack.c.b16 %v1532, %v1532
        %v1565 = vpack.c.b16 %v1533, %v1533
        %v1566 = vpack.c.b16 %v1534, %v1534
        %v1567 = vpack.c.b16 %v1535, %v1535
        %v1568 = vpack.c.b16 %v1536, %v1536
        %v1569 = vpack.c.b16 %v1537, %v1537
        %v1570 = vpack.c.b16 %v1538, %v1538
        %v1571 = vpack.c.b16 %v1539, %v1539
        %v1572 = vpack.c.b16 %v1540, %v1540
        %v1573 = vpack.c.b16 %v1541, %v1541
        %v1574 = vpack.c.b16 %v1542, %v1542
        %v1575 = vpack.c.b16 %v1543, %v1543
        %v1576 = vpack.c.b16 %v1544, %v1544
        %v1577 = vpack.c.b16 %v1545, %v1545
        %v1578 = vpack.c.b16 %v1546, %v1546
        %v1579 = vpack.c.b16 %v1547, %v1547
        %v1580 = vpack.c.b16 %v1548, %v1548
        %v1581 = vpack.c.b16 %v1549, %v1549
        %v1582 = vpack.c.b16 %v1550, %v1550
        %v1583 = vpack.c.b16 %v1551, %v1551
        %v1584 = vpack.c.b16 %v1552, %v1552
        %v1585 = vpack.c.b16 %v1553, %v1553
        %v1586 = vpack.c.b16 %v1554, %v1554
        %v1587 = vpack.c.b16 %v1555, %v1555
        %v1588 = vpack.c.b16 %v1556, %v1556
        %v1589 = vpack.c.b16 %v1557, %v1557
        %vm1622 = vcmask 191488
        %1623 = vst.msk [vmem:[%s217] sm:$0xf] %vm1622, %v1558
        %1624 = vst.msk [vmem:[%s217 + $0x4] sm:$0xf] %vm1622, %v1559
        %1625 = vst.msk [vmem:[%s217 + $0x8] sm:$0xf] %vm1622, %v1560
        %1626 = vst.msk [vmem:[%s217 + $0xc] sm:$0xf] %vm1622, %v1561
        %1627 = vst.msk [vmem:[%s217 + $0x10] sm:$0xf] %vm1622, %v1562
        %1628 = vst.msk [vmem:[%s217 + $0x14] sm:$0xf] %vm1622, %v1563
        %1629 = vst.msk [vmem:[%s217 + $0x18] sm:$0xf] %vm1622, %v1564
        %1630 = vst.msk [vmem:[%s217 + $0x1c] sm:$0xf] %vm1622, %v1565
        %1631 = vst.msk [vmem:[%s217 + $0x20] sm:$0xf] %vm1622, %v1566
        %1632 = vst.msk [vmem:[%s217 + $0x24] sm:$0xf] %vm1622, %v1567
        %1633 = vst.msk [vmem:[%s217 + $0x28] sm:$0xf] %vm1622, %v1568
        %1634 = vst.msk [vmem:[%s217 + $0x2c] sm:$0xf] %vm1622, %v1569
        %1635 = vst.msk [vmem:[%s217 + $0x30] sm:$0xf] %vm1622, %v1570
        %1636 = vst.msk [vmem:[%s217 + $0x34] sm:$0xf] %vm1622, %v1571
        %1637 = vst.msk [vmem:[%s217 + $0x38] sm:$0xf] %vm1622, %v1572
        %1638 = vst.msk [vmem:[%s217 + $0x3c] sm:$0xf] %vm1622, %v1573
        %1639 = vst.msk [vmem:[%s217 + $0x40] sm:$0xf] %vm1622, %v1574
        %1640 = vst.msk [vmem:[%s217 + $0x44] sm:$0xf] %vm1622, %v1575
        %1641 = vst.msk [vmem:[%s217 + $0x48] sm:$0xf] %vm1622, %v1576
        %1642 = vst.msk [vmem:[%s217 + $0x4c] sm:$0xf] %vm1622, %v1577
        %1643 = vst.msk [vmem:[%s217 + $0x50] sm:$0xf] %vm1622, %v1578
        %1644 = vst.msk [vmem:[%s217 + $0x54] sm:$0xf] %vm1622, %v1579
        %1645 = vst.msk [vmem:[%s217 + $0x58] sm:$0xf] %vm1622, %v1580
        %1646 = vst.msk [vmem:[%s217 + $0x5c] sm:$0xf] %vm1622, %v1581
        %1647 = vst.msk [vmem:[%s217 + $0x60] sm:$0xf] %vm1622, %v1582
        %1648 = vst.msk [vmem:[%s217 + $0x64] sm:$0xf] %vm1622, %v1583
        %1649 = vst.msk [vmem:[%s217 + $0x68] sm:$0xf] %vm1622, %v1584
        %1650 = vst.msk [vmem:[%s217 + $0x6c] sm:$0xf] %vm1622, %v1585
        %1651 = vst.msk [vmem:[%s217 + $0x70] sm:$0xf] %vm1622, %v1586
        %1652 = vst.msk [vmem:[%s217 + $0x74] sm:$0xf] %vm1622, %v1587
        %1653 = vst.msk [vmem:[%s217 + $0x78] sm:$0xf] %vm1622, %v1588
        %1654 = vst.msk [vmem:[%s217 + $0x7c] sm:$0xf] %vm1622, %v1589
        %s1655 = sand.u32 %s137, 1
        %s1656 = scalar_lea.sflag [#allocation4], %s1655
        %s1657 = sand.u32 %s137, 1
        %s1658 = smul.addr %s1657, 128
        %s1659 = scalar_lea.vmem [#allocation3], %s1658
        // Predicated region
        $region41: #{tpu_custom_call.1} parent=39 // pred_check
          %p1660 = pneg %p147
        $region42: #{tpu_custom_call.1} parent=39 // pred_check_branch
          %1662 = sbr.rel (%p1660) target = $region44
        $region43: #{tpu_custom_call.1} parent=39 // pred_region
          %s1664 = ssub.s32 2048, 2048
          %1665 = vsyncadd %s1656, %s1664
          %s1666 = smul.addr %s19, 32
          %s1667 = smul.addr %s1666, 64
          %s1668 = scalar_lea.hbm %s5, %s1667
          %s1669 = sshll.u32 %s1659, 4
          %s1670 = int_to_ptr.vmem [resolvable:$true] %s1669
          %1675 = dma.vmem_to_hbm [thread:$0]  %s1670, 2048, %s1668, %s1656, 64, 64, 4
        $region44: #{tpu_custom_call.1} parent=39 // pred_fallthru
          _
      $region40: #{tpu_custom_call.1} parent=5 // pred_fallthru
        _
      %p1676 = scmp.le.s32.totalorder 2, %s14
      // Predicated region
      $region45: #{tpu_custom_call.1} parent=5 // pred_check
        %p1677 = pneg %p1676
      $region46: #{tpu_custom_call.1} parent=5 // pred_check_branch
        %1679 = sbr.rel (%p1677) target = $region48
      $region47: #{tpu_custom_call.1} parent=5 // pred_region
        %s1680 = ssub.s32 %s14, 2
        // Predicated region
        $region49: #{tpu_custom_call.1} parent=47 // pred_check
          %p1681 = pneg %p153
        $region50: #{tpu_custom_call.1} parent=47 // pred_check_branch
          %1683 = sbr.rel (%p1681) target = $region52
        $region51: #{tpu_custom_call.1} parent=47 // pred_region
          %s1684 = sand.u32 %s138, 1
          %s1685 = scalar_lea.sflag [#allocation4], %s1684
          %s1686 = sand.u32 %s138, 1
          %s1687 = smul.addr %s1686, 128
          %s1688 = scalar_lea.vmem [#allocation3], %s1687
          %1689 = dma.done %s1685, 2048
        $region52: #{tpu_custom_call.1} parent=47 // pred_fallthru
          _
      $region48: #{tpu_custom_call.1} parent=5 // pred_fallthru
        _
    $region6: #{tpu_custom_call.1} parent=1 // loop_footer
      %s18 = sadd.s32 1, %s14
    $region7: #{tpu_custom_call.1} parent=1 // loop_footer_branch
      %13 = sbr.rel target = $region3
    $region8: #{tpu_custom_call.1} parent=1 // loop_exit
      _
    %1690 = vsyncpa [#allocation4], 1
    %s1691 = scalar_lea.sflag [#allocation4], 1
    %1692 = vsyncpa %s1691, 1

</llo_original>
